<compile_context>
chip_gen: v7x
topology: tpu7x:2x2x1
jax: 0.10.0
libtpu: 0.0.40
codegen_flags: <defaults>
</compile_context>

<pallas_src>
import functools

import jax
import jax.numpy as jnp
import numpy as np
from jax import lax
from jax.experimental import pallas as pl
from jax.experimental.pallas import tpu as pltpu


def _decoder_kernel(zf_ref, wih_ref, whh_ref, b_ref, wlv_ref, blv_ref, o_ref,
                    *, B, T):
    H = whh_ref.shape[0]
    G = 4 * H

    # g-gate fold: tanh(p) == 2*sigmoid(2*p) - 1, so scale the g-gate columns
    # (2H:3H) of both the hoisted input projection and W_hh by 2 and use a
    # single whole-vreg sigmoid per recurrence step.
    col = lax.broadcasted_iota(jnp.int32, (1, G), 1)
    g_scale = jnp.where((col >= 2 * H) & (col < 3 * H), 2.0, 1.0
                        ).astype(jnp.float32)

    # (1) Hoisted, non-recurrent input projection for ALL timesteps at once,
    #     kept in registers.  Rows are batch-major: row = b*T + t.
    gx = (jnp.dot(zf_ref[...], wih_ref[...],
                  preferred_element_type=jnp.float32) + b_ref[...]) * g_scale
    gx3 = gx.reshape(B, T, G)          # layout-preserving (no tile crossing)

    w_hh = whh_ref[...] * g_scale      # (H, 4H), reused every step
    # NOTE: staging W_hh in the MXU across steps (pltpu.matmul_push_rhs /
    # matmul_acc_lhs / matmul_pop) would avoid re-pushing the RHS each step;
    # kept as jnp.dot for robustness at these tiny shapes.

    h = jnp.zeros((B, H), jnp.float32)
    c = jnp.zeros((B, H), jnp.float32)
    hs = []

    # (2) Sequential recurrence, statically unrolled (T is small & static;
    #     switch to lax.fori_loop(..., unroll=k) with pl.ds indexing if T
    #     grows enough to spill the vreg file).  Only h @ W_hh and the gate
    #     elementwise math sit on the serial path.
    for t in range(T):
        gates = gx3[:, t, :] + jnp.dot(h, w_hh,
                                       preferred_element_type=jnp.float32)
        sg = jax.nn.sigmoid(gates)                  # one EUP dispatch per step
        i_g = sg[:, 0 * H:1 * H]
        f_g = sg[:, 1 * H:2 * H]
        g_g = 2.0 * sg[:, 2 * H:3 * H] - 1.0        # == tanh(pre-fold g)
        o_g = sg[:, 3 * H:4 * H]
        c = f_g * c + i_g * g_g
        h = o_g * jnp.tanh(c)
        hs.append(h)                                # stays in vregs

    # (3) Reassemble hidden states batch-major (row = b*T + t) with static
    #     sublane concats (off the serial path), then one batched log_var
    #     Linear + sigmoid + a single slab writeback.
    hs_bm = jnp.concatenate(
        [hs[t][b:b + 1, :] for b in range(B) for t in range(T)], axis=0)
    lv = (jnp.dot(hs_bm, wlv_ref[...],
                  preferred_element_type=jnp.float32) + blv_ref[...])
    o_ref[...] = jax.nn.sigmoid(lv).astype(o_ref.dtype)
    # TODO(synk): the `mu` Linear of the PyTorch forward is dead code w.r.t.
    # the returned value and is intentionally not computed here.


@jax.jit
def decoder_forward(z, w_ih_t, w_hh_t, b, w_lv_t, b_lv):
    B, T, L = z.shape
    O = w_lv_t.shape[1]

    # Batch-major flatten (row = b*T + t): a contiguous reshape (bitcast) —
    # no transpose launches / HBM round-trips outside the kernel.
    zf = z.reshape(B * T, L)

    # TODO(synk): on v7x (2 TensorCores/chip) a batch-parallel grid axis with
    # dimension_semantics=("parallel",) would use the second core; left
    # gridless here to stay launch-minimal on 1-TC v5e/v6e.
    kernel = functools.partial(_decoder_kernel, B=B, T=T)
    out_flat = pl.pallas_call(
        kernel,
        out_shape=jax.ShapeDtypeStruct((B * T, O), jnp.float32),
        in_specs=[pl.BlockSpec(memory_space=pltpu.MemorySpace.VMEM)] * 6,
        out_specs=pl.BlockSpec(memory_space=pltpu.MemorySpace.VMEM),
    )(zf, w_ih_t, w_hh_t, b, w_lv_t, b_lv)

    # Contiguous reshape back to (B, T, O) — also free.
    return out_flat.reshape(B, T, O)


def reference_forward(z, w_ih_t, w_hh_t, b, w_lv_t, b_lv):
    """Pure-JAX reference (lax.scan LSTM) matching PyTorch nn.LSTM semantics."""
    B, T, L = z.shape
    H = w_hh_t.shape[0]

    def step(carry, x_t):
        h, c = carry
        gates = x_t @ w_ih_t + h @ w_hh_t + b[0]
        i_g = jax.nn.sigmoid(gates[:, 0 * H:1 * H])
        f_g = jax.nn.sigmoid(gates[:, 1 * H:2 * H])
        g_g = jnp.tanh(gates[:, 2 * H:3 * H])
        o_g = jax.nn.sigmoid(gates[:, 3 * H:4 * H])
        c_new = f_g * c + i_g * g_g
        h_new = o_g * jnp.tanh(c_new)
        return (h_new, c_new), h_new

    init = (jnp.zeros((B, H), jnp.float32), jnp.zeros((B, H), jnp.float32))
    _, hs = lax.scan(step, init, jnp.transpose(z, (1, 0, 2)))   # (T, B, H)
    hs = jnp.transpose(hs, (1, 0, 2)).reshape(B * T, H)
    log_var = hs @ w_lv_t + b_lv[0]
    return jax.nn.sigmoid(log_var).reshape(B, T, -1)


def init_params(key, latent_size, lstm_h_dim, out_size):
    """Deterministic synthetic init (PyTorch-style uniform(-1/sqrt(H), 1/sqrt(H)))."""
    H = lstm_h_dim
    k = 1.0 / np.sqrt(H)
    keys = jax.random.split(key, 6)
    w_ih = jax.random.uniform(keys[0], (4 * H, latent_size), jnp.float32, -k, k)
    w_hh = jax.random.uniform(keys[1], (4 * H, H), jnp.float32, -k, k)
    b_ih = jax.random.uniform(keys[2], (4 * H,), jnp.float32, -k, k)
    b_hh = jax.random.uniform(keys[3], (4 * H,), jnp.float32, -k, k)
    w_lv = jax.random.uniform(keys[4], (out_size, H), jnp.float32, -k, k)
    b_lv = jax.random.uniform(keys[5], (out_size,), jnp.float32, -k, k)
    # NOTE: the `mu` Linear of the PyTorch module is dead code w.r.t. the
    # returned value, so its parameters are not materialized here.
    return dict(
        w_ih_t=w_ih.T,                          # (L, 4H)
        w_hh_t=w_hh.T,                          # (H, 4H)
        b=(b_ih + b_hh)[None, :],               # (1, 4H)
        w_lv_t=w_lv.T,                          # (H, out)
        b_lv=b_lv[None, :],                     # (1, out)
    )


if __name__ == "__main__":
    latent_size, lstm_h_dim, out_size = 4, 32, 4
    batch, window = 2, 8

    root = jax.random.PRNGKey(0)
    k_z, k_p = jax.random.split(root)
    z = jax.random.normal(k_z, (batch, window, latent_size), jnp.float32)
    p = init_params(k_p, latent_size, lstm_h_dim, out_size)

    w = decoder_forward(z, p["w_ih_t"], p["w_hh_t"], p["b"],
                        p["w_lv_t"], p["b_lv"])
    w = jax.block_until_ready(w)

    w_ref = reference_forward(z, p["w_ih_t"], p["w_hh_t"], p["b"],
                              p["w_lv_t"], p["b_lv"])
    np.testing.assert_allclose(np.asarray(w), np.asarray(w_ref),
                               rtol=1e-5, atol=1e-5)
    assert w.shape == (batch, window, out_size)
    print("KERNEL_OK")
</pallas_src>

<mosaic_0001>
module attributes {stable_mosaic.version = 11 : i64} {
  func.func @_decoder_kernel(%arg0: memref<16x4xf32, #tpu.memory_space<vmem>>, %arg1: memref<4x128xf32, #tpu.memory_space<vmem>>, %arg2: memref<32x128xf32, #tpu.memory_space<vmem>>, %arg3: memref<1x128xf32, #tpu.memory_space<vmem>>, %arg4: memref<32x4xf32, #tpu.memory_space<vmem>>, %arg5: memref<1x4xf32, #tpu.memory_space<vmem>>, %arg6: memref<16x4xf32, #tpu.memory_space<vmem>>) attributes {dimension_semantics = [], scalar_prefetch = 0 : i64, scratch_operands = 0 : i64, tpu.core_type = #tpu.core_type<tc>} {
    %0 = tpu.iota {dimensions = array<i32: 1>} : vector<1x128xi32>
    %c64_i32 = arith.constant 64 : i32
    %1 = vector.broadcast %c64_i32 : i32 to vector<1x128xi32>
    %2 = arith.cmpi sge, %0, %1 : vector<1x128xi32>
    %c96_i32 = arith.constant 96 : i32
    %3 = vector.broadcast %c96_i32 : i32 to vector<1x128xi32>
    %4 = arith.cmpi slt, %0, %3 : vector<1x128xi32>
    %5 = arith.andi %2, %4 : vector<1x128xi1>
    %cst = arith.constant 2.000000e+00 : f32
    %cst_0 = arith.constant 1.000000e+00 : f32
    %6 = vector.broadcast %cst : f32 to vector<1x128xf32>
    %7 = vector.broadcast %cst_0 : f32 to vector<1x128xf32>
    %8 = arith.select %5, %6, %7 : vector<1x128xi1>, vector<1x128xf32>
    %c0 = arith.constant 0 : index
    %c0_1 = arith.constant 0 : index
    %9 = vector.load %arg0[%c0, %c0_1] : memref<16x4xf32, #tpu.memory_space<vmem>>, vector<16x4xf32>
    %c0_2 = arith.constant 0 : index
    %c0_3 = arith.constant 0 : index
    %10 = vector.load %arg1[%c0_2, %c0_3] : memref<4x128xf32, #tpu.memory_space<vmem>>, vector<4x128xf32>
    %cst_4 = arith.constant dense<0.000000e+00> : vector<16x128xf32>
    %11 = tpu.matmul %9, %10, %cst_4 {dimension_numbers = #tpu.dot_dimension_numbers<[1], [0], [0], [1], [0, 0, 1, 1], [], []>} : vector<16x4xf32>, vector<4x128xf32>, vector<16x128xf32> -> vector<16x128xf32>
    %c0_5 = arith.constant 0 : index
    %c0_6 = arith.constant 0 : index
    %12 = vector.load %arg3[%c0_5, %c0_6] : memref<1x128xf32, #tpu.memory_space<vmem>>, vector<1x128xf32>
    %13 = vector.broadcast %12 : vector<1x128xf32> to vector<16x128xf32>
    %14 = arith.addf %11, %13 : vector<16x128xf32>
    %15 = vector.broadcast %8 : vector<1x128xf32> to vector<16x128xf32>
    %16 = arith.mulf %14, %15 : vector<16x128xf32>
    %17 = vector.shape_cast %16 : vector<16x128xf32> to vector<2x8x128xf32>
    %c0_7 = arith.constant 0 : index
    %c0_8 = arith.constant 0 : index
    %18 = vector.load %arg2[%c0_7, %c0_8] : memref<32x128xf32, #tpu.memory_space<vmem>>, vector<32x128xf32>
    %19 = vector.broadcast %8 : vector<1x128xf32> to vector<32x128xf32>
    %20 = arith.mulf %18, %19 : vector<32x128xf32>
    %cst_9 = arith.constant 0.000000e+00 : f32
    %21 = vector.broadcast %cst_9 : f32 to vector<2x32xf32>
    %cst_10 = arith.constant 0.000000e+00 : f32
    %22 = vector.broadcast %cst_10 : f32 to vector<2x32xf32>
    %23 = vector.extract_strided_slice %17 {offsets = [0, 0, 0], sizes = [2, 1, 128], strides = [1, 1, 1]} : vector<2x8x128xf32> to vector<2x1x128xf32>
    %24 = vector.shape_cast %23 : vector<2x1x128xf32> to vector<2x128xf32>
    %cst_11 = arith.constant dense<0.000000e+00> : vector<2x128xf32>
    %25 = tpu.matmul %21, %20, %cst_11 {dimension_numbers = #tpu.dot_dimension_numbers<[1], [0], [0], [1], [0, 0, 1, 1], [], []>} : vector<2x32xf32>, vector<32x128xf32>, vector<2x128xf32> -> vector<2x128xf32>
    %26 = arith.addf %24, %25 : vector<2x128xf32>
    %27 = arith.negf %26 : vector<2x128xf32>
    %28 = math.exp %27 : vector<2x128xf32>
    %cst_12 = arith.constant 1.000000e+00 : f32
    %29 = vector.broadcast %cst_12 : f32 to vector<2x128xf32>
    %30 = arith.addf %29, %28 : vector<2x128xf32>
    %31 = arith.divf %29, %30 : vector<2x128xf32>
    %32 = vector.extract_strided_slice %31 {offsets = [0, 0], sizes = [2, 32], strides = [1, 1]} : vector<2x128xf32> to vector<2x32xf32>
    %33 = vector.extract_strided_slice %31 {offsets = [0, 32], sizes = [2, 32], strides = [1, 1]} : vector<2x128xf32> to vector<2x32xf32>
    %34 = vector.extract_strided_slice %31 {offsets = [0, 64], sizes = [2, 32], strides = [1, 1]} : vector<2x128xf32> to vector<2x32xf32>
    %cst_13 = arith.constant 2.000000e+00 : f32
    %35 = vector.broadcast %cst_13 : f32 to vector<2x32xf32>
    %36 = arith.mulf %35, %34 : vector<2x32xf32>
    %cst_14 = arith.constant 1.000000e+00 : f32
    %37 = vector.broadcast %cst_14 : f32 to vector<2x32xf32>
    %38 = arith.subf %36, %37 : vector<2x32xf32>
    %39 = vector.extract_strided_slice %31 {offsets = [0, 96], sizes = [2, 32], strides = [1, 1]} : vector<2x128xf32> to vector<2x32xf32>
    %40 = arith.mulf %33, %22 : vector<2x32xf32>
    %41 = arith.mulf %32, %38 : vector<2x32xf32>
    %42 = arith.addf %40, %41 : vector<2x32xf32>
    %43 = math.tanh %42 : vector<2x32xf32>
    %44 = arith.mulf %39, %43 : vector<2x32xf32>
    %45 = vector.extract_strided_slice %17 {offsets = [0, 1, 0], sizes = [2, 1, 128], strides = [1, 1, 1]} : vector<2x8x128xf32> to vector<2x1x128xf32>
    %46 = vector.shape_cast %45 : vector<2x1x128xf32> to vector<2x128xf32>
    %cst_15 = arith.constant dense<0.000000e+00> : vector<2x128xf32>
    %47 = tpu.matmul %44, %20, %cst_15 {dimension_numbers = #tpu.dot_dimension_numbers<[1], [0], [0], [1], [0, 0, 1, 1], [], []>} : vector<2x32xf32>, vector<32x128xf32>, vector<2x128xf32> -> vector<2x128xf32>
    %48 = arith.addf %46, %47 : vector<2x128xf32>
    %49 = arith.negf %48 : vector<2x128xf32>
    %50 = math.exp %49 : vector<2x128xf32>
    %cst_16 = arith.constant 1.000000e+00 : f32
    %51 = vector.broadcast %cst_16 : f32 to vector<2x128xf32>
    %52 = arith.addf %51, %50 : vector<2x128xf32>
    %53 = arith.divf %51, %52 : vector<2x128xf32>
    %54 = vector.extract_strided_slice %53 {offsets = [0, 0], sizes = [2, 32], strides = [1, 1]} : vector<2x128xf32> to vector<2x32xf32>
    %55 = vector.extract_strided_slice %53 {offsets = [0, 32], sizes = [2, 32], strides = [1, 1]} : vector<2x128xf32> to vector<2x32xf32>
    %56 = vector.extract_strided_slice %53 {offsets = [0, 64], sizes = [2, 32], strides = [1, 1]} : vector<2x128xf32> to vector<2x32xf32>
    %cst_17 = arith.constant 2.000000e+00 : f32
    %57 = vector.broadcast %cst_17 : f32 to vector<2x32xf32>
    %58 = arith.mulf %57, %56 : vector<2x32xf32>
    %cst_18 = arith.constant 1.000000e+00 : f32
    %59 = vector.broadcast %cst_18 : f32 to vector<2x32xf32>
    %60 = arith.subf %58, %59 : vector<2x32xf32>
    %61 = vector.extract_strided_slice %53 {offsets = [0, 96], sizes = [2, 32], strides = [1, 1]} : vector<2x128xf32> to vector<2x32xf32>
    %62 = arith.mulf %55, %42 : vector<2x32xf32>
    %63 = arith.mulf %54, %60 : vector<2x32xf32>
    %64 = arith.addf %62, %63 : vector<2x32xf32>
    %65 = math.tanh %64 : vector<2x32xf32>
    %66 = arith.mulf %61, %65 : vector<2x32xf32>
    %67 = vector.extract_strided_slice %17 {offsets = [0, 2, 0], sizes = [2, 1, 128], strides = [1, 1, 1]} : vector<2x8x128xf32> to vector<2x1x128xf32>
    %68 = vector.shape_cast %67 : vector<2x1x128xf32> to vector<2x128xf32>
    %cst_19 = arith.constant dense<0.000000e+00> : vector<2x128xf32>
    %69 = tpu.matmul %66, %20, %cst_19 {dimension_numbers = #tpu.dot_dimension_numbers<[1], [0], [0], [1], [0, 0, 1, 1], [], []>} : vector<2x32xf32>, vector<32x128xf32>, vector<2x128xf32> -> vector<2x128xf32>
    %70 = arith.addf %68, %69 : vector<2x128xf32>
    %71 = arith.negf %70 : vector<2x128xf32>
    %72 = math.exp %71 : vector<2x128xf32>
    %cst_20 = arith.constant 1.000000e+00 : f32
    %73 = vector.broadcast %cst_20 : f32 to vector<2x128xf32>
    %74 = arith.addf %73, %72 : vector<2x128xf32>
    %75 = arith.divf %73, %74 : vector<2x128xf32>
    %76 = vector.extract_strided_slice %75 {offsets = [0, 0], sizes = [2, 32], strides = [1, 1]} : vector<2x128xf32> to vector<2x32xf32>
    %77 = vector.extract_strided_slice %75 {offsets = [0, 32], sizes = [2, 32], strides = [1, 1]} : vector<2x128xf32> to vector<2x32xf32>
    %78 = vector.extract_strided_slice %75 {offsets = [0, 64], sizes = [2, 32], strides = [1, 1]} : vector<2x128xf32> to vector<2x32xf32>
    %cst_21 = arith.constant 2.000000e+00 : f32
    %79 = vector.broadcast %cst_21 : f32 to vector<2x32xf32>
    %80 = arith.mulf %79, %78 : vector<2x32xf32>
    %cst_22 = arith.constant 1.000000e+00 : f32
    %81 = vector.broadcast %cst_22 : f32 to vector<2x32xf32>
    %82 = arith.subf %80, %81 : vector<2x32xf32>
    %83 = vector.extract_strided_slice %75 {offsets = [0, 96], sizes = [2, 32], strides = [1, 1]} : vector<2x128xf32> to vector<2x32xf32>
    %84 = arith.mulf %77, %64 : vector<2x32xf32>
    %85 = arith.mulf %76, %82 : vector<2x32xf32>
    %86 = arith.addf %84, %85 : vector<2x32xf32>
    %87 = math.tanh %86 : vector<2x32xf32>
    %88 = arith.mulf %83, %87 : vector<2x32xf32>
    %89 = vector.extract_strided_slice %17 {offsets = [0, 3, 0], sizes = [2, 1, 128], strides = [1, 1, 1]} : vector<2x8x128xf32> to vector<2x1x128xf32>
    %90 = vector.shape_cast %89 : vector<2x1x128xf32> to vector<2x128xf32>
    %cst_23 = arith.constant dense<0.000000e+00> : vector<2x128xf32>
    %91 = tpu.matmul %88, %20, %cst_23 {dimension_numbers = #tpu.dot_dimension_numbers<[1], [0], [0], [1], [0, 0, 1, 1], [], []>} : vector<2x32xf32>, vector<32x128xf32>, vector<2x128xf32> -> vector<2x128xf32>
    %92 = arith.addf %90, %91 : vector<2x128xf32>
    %93 = arith.negf %92 : vector<2x128xf32>
    %94 = math.exp %93 : vector<2x128xf32>
    %cst_24 = arith.constant 1.000000e+00 : f32
    %95 = vector.broadcast %cst_24 : f32 to vector<2x128xf32>
    %96 = arith.addf %95, %94 : vector<2x128xf32>
    %97 = arith.divf %95, %96 : vector<2x128xf32>
    %98 = vector.extract_strided_slice %97 {offsets = [0, 0], sizes = [2, 32], strides = [1, 1]} : vector<2x128xf32> to vector<2x32xf32>
    %99 = vector.extract_strided_slice %97 {offsets = [0, 32], sizes = [2, 32], strides = [1, 1]} : vector<2x128xf32> to vector<2x32xf32>
    %100 = vector.extract_strided_slice %97 {offsets = [0, 64], sizes = [2, 32], strides = [1, 1]} : vector<2x128xf32> to vector<2x32xf32>
    %cst_25 = arith.constant 2.000000e+00 : f32
    %101 = vector.broadcast %cst_25 : f32 to vector<2x32xf32>
    %102 = arith.mulf %101, %100 : vector<2x32xf32>
    %cst_26 = arith.constant 1.000000e+00 : f32
    %103 = vector.broadcast %cst_26 : f32 to vector<2x32xf32>
    %104 = arith.subf %102, %103 : vector<2x32xf32>
    %105 = vector.extract_strided_slice %97 {offsets = [0, 96], sizes = [2, 32], strides = [1, 1]} : vector<2x128xf32> to vector<2x32xf32>
    %106 = arith.mulf %99, %86 : vector<2x32xf32>
    %107 = arith.mulf %98, %104 : vector<2x32xf32>
    %108 = arith.addf %106, %107 : vector<2x32xf32>
    %109 = math.tanh %108 : vector<2x32xf32>
    %110 = arith.mulf %105, %109 : vector<2x32xf32>
    %111 = vector.extract_strided_slice %17 {offsets = [0, 4, 0], sizes = [2, 1, 128], strides = [1, 1, 1]} : vector<2x8x128xf32> to vector<2x1x128xf32>
    %112 = vector.shape_cast %111 : vector<2x1x128xf32> to vector<2x128xf32>
    %cst_27 = arith.constant dense<0.000000e+00> : vector<2x128xf32>
    %113 = tpu.matmul %110, %20, %cst_27 {dimension_numbers = #tpu.dot_dimension_numbers<[1], [0], [0], [1], [0, 0, 1, 1], [], []>} : vector<2x32xf32>, vector<32x128xf32>, vector<2x128xf32> -> vector<2x128xf32>
    %114 = arith.addf %112, %113 : vector<2x128xf32>
    %115 = arith.negf %114 : vector<2x128xf32>
    %116 = math.exp %115 : vector<2x128xf32>
    %cst_28 = arith.constant 1.000000e+00 : f32
    %117 = vector.broadcast %cst_28 : f32 to vector<2x128xf32>
    %118 = arith.addf %117, %116 : vector<2x128xf32>
    %119 = arith.divf %117, %118 : vector<2x128xf32>
    %120 = vector.extract_strided_slice %119 {offsets = [0, 0], sizes = [2, 32], strides = [1, 1]} : vector<2x128xf32> to vector<2x32xf32>
    %121 = vector.extract_strided_slice %119 {offsets = [0, 32], sizes = [2, 32], strides = [1, 1]} : vector<2x128xf32> to vector<2x32xf32>
    %122 = vector.extract_strided_slice %119 {offsets = [0, 64], sizes = [2, 32], strides = [1, 1]} : vector<2x128xf32> to vector<2x32xf32>
    %cst_29 = arith.constant 2.000000e+00 : f32
    %123 = vector.broadcast %cst_29 : f32 to vector<2x32xf32>
    %124 = arith.mulf %123, %122 : vector<2x32xf32>
    %cst_30 = arith.constant 1.000000e+00 : f32
    %125 = vector.broadcast %cst_30 : f32 to vector<2x32xf32>
    %126 = arith.subf %124, %125 : vector<2x32xf32>
    %127 = vector.extract_strided_slice %119 {offsets = [0, 96], sizes = [2, 32], strides = [1, 1]} : vector<2x128xf32> to vector<2x32xf32>
    %128 = arith.mulf %121, %108 : vector<2x32xf32>
    %129 = arith.mulf %120, %126 : vector<2x32xf32>
    %130 = arith.addf %128, %129 : vector<2x32xf32>
    %131 = math.tanh %130 : vector<2x32xf32>
    %132 = arith.mulf %127, %131 : vector<2x32xf32>
    %133 = vector.extract_strided_slice %17 {offsets = [0, 5, 0], sizes = [2, 1, 128], strides = [1, 1, 1]} : vector<2x8x128xf32> to vector<2x1x128xf32>
    %134 = vector.shape_cast %133 : vector<2x1x128xf32> to vector<2x128xf32>
    %cst_31 = arith.constant dense<0.000000e+00> : vector<2x128xf32>
    %135 = tpu.matmul %132, %20, %cst_31 {dimension_numbers = #tpu.dot_dimension_numbers<[1], [0], [0], [1], [0, 0, 1, 1], [], []>} : vector<2x32xf32>, vector<32x128xf32>, vector<2x128xf32> -> vector<2x128xf32>
    %136 = arith.addf %134, %135 : vector<2x128xf32>
    %137 = arith.negf %136 : vector<2x128xf32>
    %138 = math.exp %137 : vector<2x128xf32>
    %cst_32 = arith.constant 1.000000e+00 : f32
    %139 = vector.broadcast %cst_32 : f32 to vector<2x128xf32>
    %140 = arith.addf %139, %138 : vector<2x128xf32>
    %141 = arith.divf %139, %140 : vector<2x128xf32>
    %142 = vector.extract_strided_slice %141 {offsets = [0, 0], sizes = [2, 32], strides = [1, 1]} : vector<2x128xf32> to vector<2x32xf32>
    %143 = vector.extract_strided_slice %141 {offsets = [0, 32], sizes = [2, 32], strides = [1, 1]} : vector<2x128xf32> to vector<2x32xf32>
    %144 = vector.extract_strided_slice %141 {offsets = [0, 64], sizes = [2, 32], strides = [1, 1]} : vector<2x128xf32> to vector<2x32xf32>
    %cst_33 = arith.constant 2.000000e+00 : f32
    %145 = vector.broadcast %cst_33 : f32 to vector<2x32xf32>
    %146 = arith.mulf %145, %144 : vector<2x32xf32>
    %cst_34 = arith.constant 1.000000e+00 : f32
    %147 = vector.broadcast %cst_34 : f32 to vector<2x32xf32>
    %148 = arith.subf %146, %147 : vector<2x32xf32>
    %149 = vector.extract_strided_slice %141 {offsets = [0, 96], sizes = [2, 32], strides = [1, 1]} : vector<2x128xf32> to vector<2x32xf32>
    %150 = arith.mulf %143, %130 : vector<2x32xf32>
    %151 = arith.mulf %142, %148 : vector<2x32xf32>
    %152 = arith.addf %150, %151 : vector<2x32xf32>
    %153 = math.tanh %152 : vector<2x32xf32>
    %154 = arith.mulf %149, %153 : vector<2x32xf32>
    %155 = vector.extract_strided_slice %17 {offsets = [0, 6, 0], sizes = [2, 1, 128], strides = [1, 1, 1]} : vector<2x8x128xf32> to vector<2x1x128xf32>
    %156 = vector.shape_cast %155 : vector<2x1x128xf32> to vector<2x128xf32>
    %cst_35 = arith.constant dense<0.000000e+00> : vector<2x128xf32>
    %157 = tpu.matmul %154, %20, %cst_35 {dimension_numbers = #tpu.dot_dimension_numbers<[1], [0], [0], [1], [0, 0, 1, 1], [], []>} : vector<2x32xf32>, vector<32x128xf32>, vector<2x128xf32> -> vector<2x128xf32>
    %158 = arith.addf %156, %157 : vector<2x128xf32>
    %159 = arith.negf %158 : vector<2x128xf32>
    %160 = math.exp %159 : vector<2x128xf32>
    %cst_36 = arith.constant 1.000000e+00 : f32
    %161 = vector.broadcast %cst_36 : f32 to vector<2x128xf32>
    %162 = arith.addf %161, %160 : vector<2x128xf32>
    %163 = arith.divf %161, %162 : vector<2x128xf32>
    %164 = vector.extract_strided_slice %163 {offsets = [0, 0], sizes = [2, 32], strides = [1, 1]} : vector<2x128xf32> to vector<2x32xf32>
    %165 = vector.extract_strided_slice %163 {offsets = [0, 32], sizes = [2, 32], strides = [1, 1]} : vector<2x128xf32> to vector<2x32xf32>
    %166 = vector.extract_strided_slice %163 {offsets = [0, 64], sizes = [2, 32], strides = [1, 1]} : vector<2x128xf32> to vector<2x32xf32>
    %cst_37 = arith.constant 2.000000e+00 : f32
    %167 = vector.broadcast %cst_37 : f32 to vector<2x32xf32>
    %168 = arith.mulf %167, %166 : vector<2x32xf32>
    %cst_38 = arith.constant 1.000000e+00 : f32
    %169 = vector.broadcast %cst_38 : f32 to vector<2x32xf32>
    %170 = arith.subf %168, %169 : vector<2x32xf32>
    %171 = vector.extract_strided_slice %163 {offsets = [0, 96], sizes = [2, 32], strides = [1, 1]} : vector<2x128xf32> to vector<2x32xf32>
    %172 = arith.mulf %165, %152 : vector<2x32xf32>
    %173 = arith.mulf %164, %170 : vector<2x32xf32>
    %174 = arith.addf %172, %173 : vector<2x32xf32>
    %175 = math.tanh %174 : vector<2x32xf32>
    %176 = arith.mulf %171, %175 : vector<2x32xf32>
    %177 = vector.extract_strided_slice %17 {offsets = [0, 7, 0], sizes = [2, 1, 128], strides = [1, 1, 1]} : vector<2x8x128xf32> to vector<2x1x128xf32>
    %178 = vector.shape_cast %177 : vector<2x1x128xf32> to vector<2x128xf32>
    %cst_39 = arith.constant dense<0.000000e+00> : vector<2x128xf32>
    %179 = tpu.matmul %176, %20, %cst_39 {dimension_numbers = #tpu.dot_dimension_numbers<[1], [0], [0], [1], [0, 0, 1, 1], [], []>} : vector<2x32xf32>, vector<32x128xf32>, vector<2x128xf32> -> vector<2x128xf32>
    %180 = arith.addf %178, %179 : vector<2x128xf32>
    %181 = arith.negf %180 : vector<2x128xf32>
    %182 = math.exp %181 : vector<2x128xf32>
    %cst_40 = arith.constant 1.000000e+00 : f32
    %183 = vector.broadcast %cst_40 : f32 to vector<2x128xf32>
    %184 = arith.addf %183, %182 : vector<2x128xf32>
    %185 = arith.divf %183, %184 : vector<2x128xf32>
    %186 = vector.extract_strided_slice %185 {offsets = [0, 0], sizes = [2, 32], strides = [1, 1]} : vector<2x128xf32> to vector<2x32xf32>
    %187 = vector.extract_strided_slice %185 {offsets = [0, 32], sizes = [2, 32], strides = [1, 1]} : vector<2x128xf32> to vector<2x32xf32>
    %188 = vector.extract_strided_slice %185 {offsets = [0, 64], sizes = [2, 32], strides = [1, 1]} : vector<2x128xf32> to vector<2x32xf32>
    %cst_41 = arith.constant 2.000000e+00 : f32
    %189 = vector.broadcast %cst_41 : f32 to vector<2x32xf32>
    %190 = arith.mulf %189, %188 : vector<2x32xf32>
    %cst_42 = arith.constant 1.000000e+00 : f32
    %191 = vector.broadcast %cst_42 : f32 to vector<2x32xf32>
    %192 = arith.subf %190, %191 : vector<2x32xf32>
    %193 = vector.extract_strided_slice %185 {offsets = [0, 96], sizes = [2, 32], strides = [1, 1]} : vector<2x128xf32> to vector<2x32xf32>
    %194 = arith.mulf %187, %174 : vector<2x32xf32>
    %195 = arith.mulf %186, %192 : vector<2x32xf32>
    %196 = arith.addf %194, %195 : vector<2x32xf32>
    %197 = math.tanh %196 : vector<2x32xf32>
    %198 = arith.mulf %193, %197 : vector<2x32xf32>
    %199 = vector.extract_strided_slice %44 {offsets = [0, 0], sizes = [1, 32], strides = [1, 1]} : vector<2x32xf32> to vector<1x32xf32>
    %200 = vector.extract_strided_slice %66 {offsets = [0, 0], sizes = [1, 32], strides = [1, 1]} : vector<2x32xf32> to vector<1x32xf32>
    %201 = vector.extract_strided_slice %88 {offsets = [0, 0], sizes = [1, 32], strides = [1, 1]} : vector<2x32xf32> to vector<1x32xf32>
    %202 = vector.extract_strided_slice %110 {offsets = [0, 0], sizes = [1, 32], strides = [1, 1]} : vector<2x32xf32> to vector<1x32xf32>
    %203 = vector.extract_strided_slice %132 {offsets = [0, 0], sizes = [1, 32], strides = [1, 1]} : vector<2x32xf32> to vector<1x32xf32>
    %204 = vector.extract_strided_slice %154 {offsets = [0, 0], sizes = [1, 32], strides = [1, 1]} : vector<2x32xf32> to vector<1x32xf32>
    %205 = vector.extract_strided_slice %176 {offsets = [0, 0], sizes = [1, 32], strides = [1, 1]} : vector<2x32xf32> to vector<1x32xf32>
    %206 = vector.extract_strided_slice %198 {offsets = [0, 0], sizes = [1, 32], strides = [1, 1]} : vector<2x32xf32> to vector<1x32xf32>
    %207 = vector.extract_strided_slice %44 {offsets = [1, 0], sizes = [1, 32], strides = [1, 1]} : vector<2x32xf32> to vector<1x32xf32>
    %208 = vector.extract_strided_slice %66 {offsets = [1, 0], sizes = [1, 32], strides = [1, 1]} : vector<2x32xf32> to vector<1x32xf32>
    %209 = vector.extract_strided_slice %88 {offsets = [1, 0], sizes = [1, 32], strides = [1, 1]} : vector<2x32xf32> to vector<1x32xf32>
    %210 = vector.extract_strided_slice %110 {offsets = [1, 0], sizes = [1, 32], strides = [1, 1]} : vector<2x32xf32> to vector<1x32xf32>
    %211 = vector.extract_strided_slice %132 {offsets = [1, 0], sizes = [1, 32], strides = [1, 1]} : vector<2x32xf32> to vector<1x32xf32>
    %212 = vector.extract_strided_slice %154 {offsets = [1, 0], sizes = [1, 32], strides = [1, 1]} : vector<2x32xf32> to vector<1x32xf32>
    %213 = vector.extract_strided_slice %176 {offsets = [1, 0], sizes = [1, 32], strides = [1, 1]} : vector<2x32xf32> to vector<1x32xf32>
    %214 = vector.extract_strided_slice %198 {offsets = [1, 0], sizes = [1, 32], strides = [1, 1]} : vector<2x32xf32> to vector<1x32xf32>
    %215 = tpu.concatenate %199, %200, %201, %202, %203, %204, %205, %206, %207, %208, %209, %210, %211, %212, %213, %214 in 0 : vector<1x32xf32>, vector<1x32xf32>, vector<1x32xf32>, vector<1x32xf32>, vector<1x32xf32>, vector<1x32xf32>, vector<1x32xf32>, vector<1x32xf32>, vector<1x32xf32>, vector<1x32xf32>, vector<1x32xf32>, vector<1x32xf32>, vector<1x32xf32>, vector<1x32xf32>, vector<1x32xf32>, vector<1x32xf32> -> vector<16x32xf32>
    %c0_43 = arith.constant 0 : index
    %c0_44 = arith.constant 0 : index
    %216 = vector.load %arg4[%c0_43, %c0_44] : memref<32x4xf32, #tpu.memory_space<vmem>>, vector<32x4xf32>
    %cst_45 = arith.constant dense<0.000000e+00> : vector<16x4xf32>
    %217 = tpu.matmul %215, %216, %cst_45 {dimension_numbers = #tpu.dot_dimension_numbers<[1], [0], [0], [1], [0, 0, 1, 1], [], []>} : vector<16x32xf32>, vector<32x4xf32>, vector<16x4xf32> -> vector<16x4xf32>
    %c0_46 = arith.constant 0 : index
    %c0_47 = arith.constant 0 : index
    %218 = vector.load %arg5[%c0_46, %c0_47] : memref<1x4xf32, #tpu.memory_space<vmem>>, vector<1x4xf32>
    %219 = vector.broadcast %218 : vector<1x4xf32> to vector<16x4xf32>
    %220 = arith.addf %217, %219 : vector<16x4xf32>
    %221 = arith.negf %220 : vector<16x4xf32>
    %222 = math.exp %221 : vector<16x4xf32>
    %cst_48 = arith.constant 1.000000e+00 : f32
    %223 = vector.broadcast %cst_48 : f32 to vector<16x4xf32>
    %224 = arith.addf %223, %222 : vector<16x4xf32>
    %225 = arith.divf %223, %224 : vector<16x4xf32>
    %c0_49 = arith.constant 0 : index
    %c0_50 = arith.constant 0 : index
    %226 = vector.load %arg6[%c0_49, %c0_50] : memref<16x4xf32, #tpu.memory_space<vmem>>, vector<16x4xf32>
    tpu.vector_store %arg6[%c0_49, %c0_50], %225 {strides = array<i32>} : memref<16x4xf32, #tpu.memory_space<vmem>>, vector<16x4xf32>,
    return
  }
}

</mosaic_0001>

<llo_original>
// kernel: decoder_forward.1
$region0: #{decoder_forward.1}
  #allocation0 [shape = 'u32[]', space=smem, size = 0x4, offset = 0x4, fixed_abs, tag = 'smem constant byte address 0x4 - core index']
  #allocation1 [shape = 'u32[144,128]{1,0:T(1,128)}', space=vmem, size = 0x12000, scoped, tag = 'internal scratch']
  %s0 = inlined_call_operand.vmem [shape: f32[16,4], index: 0, kind: input, shape index: {}]
  %s1 = inlined_call_operand.vmem [shape: f32[4,128], index: 1, kind: input, shape index: {}]
  %s2 = inlined_call_operand.vmem [shape: f32[32,128], index: 2, kind: input, shape index: {}]
  %s3 = inlined_call_operand.vmem [shape: f32[1,128], index: 3, kind: input, shape index: {}]
  %s4 = inlined_call_operand.vmem [shape: f32[32,4], index: 4, kind: input, shape index: {}]
  %s5 = inlined_call_operand.vmem [shape: f32[1,4], index: 5, kind: input, shape index: {}]
  %s6 = inlined_call_operand.vmem [shape: f32[16,4], index: 6, kind: output, shape index: {}]
  %s7 = sld [smem:[#allocation0]]
  $region34: #{decoder_forward.1} parent=0
    _
  %s9 = ssub.s32 1, %s7
  %s10 = scalar_select 0, %s9, %s7
  // Predicated region
  $region2: #{decoder_forward.1} parent=0 // pred_check
    _
  $region3: #{decoder_forward.1} parent=0 // pred_check_branch
    %12 = sbr.rel (0) target = $region5
  $region4: #{decoder_forward.1} parent=0 // pred_region
    _
  $region5: #{decoder_forward.1} parent=0 // pred_fallthru
    _
  // Predicated region
  $region6: #{decoder_forward.1} parent=0 // pred_check
    _
  $region7: #{decoder_forward.1} parent=0 // pred_check_branch
    %14 = sbr.rel (0) target = $region9
  $region8: #{decoder_forward.1} parent=0 // pred_region
    _
  $region9: #{decoder_forward.1} parent=0 // pred_fallthru
    _
  // Predicated region
  $region10: #{decoder_forward.1} parent=0 // pred_check
    _
  $region11: #{decoder_forward.1} parent=0 // pred_check_branch
    %16 = sbr.rel (0) target = $region13
  $region12: #{decoder_forward.1} parent=0 // pred_region
    _
  $region13: #{decoder_forward.1} parent=0 // pred_fallthru
    _
  // Predicated region
  $region14: #{decoder_forward.1} parent=0 // pred_check
    _
  $region15: #{decoder_forward.1} parent=0 // pred_check_branch
    %18 = sbr.rel (0) target = $region17
  $region16: #{decoder_forward.1} parent=0 // pred_region
    _
  $region17: #{decoder_forward.1} parent=0 // pred_fallthru
    _
  // Predicated region
  $region18: #{decoder_forward.1} parent=0 // pred_check
    _
  $region19: #{decoder_forward.1} parent=0 // pred_check_branch
    %20 = sbr.rel (0) target = $region21
  $region20: #{decoder_forward.1} parent=0 // pred_region
    _
  $region21: #{decoder_forward.1} parent=0 // pred_fallthru
    _
  // Predicated region
  $region22: #{decoder_forward.1} parent=0 // pred_check
    _
  $region23: #{decoder_forward.1} parent=0 // pred_check_branch
    %22 = sbr.rel (0) target = $region25
  $region24: #{decoder_forward.1} parent=0 // pred_region
    _
  $region25: #{decoder_forward.1} parent=0 // pred_fallthru
    _
  %v23 = vlaneseq
  %v24 = vand.u32 %v23, 127
  %vm25 = vcmp.ge.s32.totalorder %v24, 64
  %vm26 = vcmp.lt.s32.totalorder %v24, 96
  %vm27 = vmand %vm25, %vm26
  %v28 = vsel %vm27, 2.0, 1.0
  %v29 = vld [vmem:[%s0] sm:$0xff]
  %v30 = vld [vmem:[%s0 + $0x8] sm:$0xff]
  %v31 = vld [vmem:[%s1] sm:$0xf]
  %v32 = vld [vmem:[%s3] sm:$0x1]
  %v34 = vlaneseq
  %v35 = vshrl.u32 %v34, 7
  %v36 = vsub.s32 0, %v35
  %v37 = vrot.slane %v32, %v36
  %vm39 = vcmask 31744
  %v41 = vsel %vm39, %v29, 0
  %v44 = vsel %vm39, %v30, 0
  %vm46 = vcmask 1043456
  %v48 = vsel %vm46, %v31, 0
  %50 = vmatprep.subr.mxu0 0.0
  %51 = vmatpush1.msra.mxu0 %v48
  %52 = vmatprep.subr.mxu0 0.0
  %53 = vmatpush1.msra.mxu0 0.0
  %54 = vmatprep.subr.mxu0 0.0
  %55 = vmatpush1.msra.mxu0 0.0
  %56 = vmatprep.subr.mxu0 0.0
  %57 = vmatpush1.msra.mxu0 0.0
  %58 = vmatprep.subr.mxu0 0.0
  %59 = vmatpush1.msra.mxu0 0.0
  %60 = vmatprep.subr.mxu0 0.0
  %61 = vmatpush1.msra.mxu0 0.0
  %62 = vmatprep.subr.mxu0 0.0
  %63 = vmatpush1.msra.mxu0 0.0
  %64 = vmatprep.subr.mxu0 0.0
  %65 = vmatpush1.msra.mxu0 0.0
  %66 = vmatprep.subr.mxu0 0.0
  %67 = vmatpush1.msra.mxu0 0.0
  %68 = vmatprep.subr.mxu0 0.0
  %69 = vmatpush1.msra.mxu0 0.0
  %70 = vmatprep.subr.mxu0 0.0
  %71 = vmatpush1.msra.mxu0 0.0
  %72 = vmatprep.subr.mxu0 0.0
  %73 = vmatpush1.msra.mxu0 0.0
  %74 = vmatprep.subr.mxu0 0.0
  %75 = vmatpush1.msra.mxu0 0.0
  %76 = vmatprep.subr.mxu0 0.0
  %77 = vmatpush1.msra.mxu0 0.0
  %78 = vmatprep.subr.mxu0 0.0
  %79 = vmatpush1.msra.mxu0 0.0
  %80 = vmatprep.subr.mxu0 0.0
  %81 = vmatpush1.msra.mxu0 0.0
  %82 = vmatprep.subr.mxu0 0.0
  %83 = vmatpush1.msra.mxu0 0.0
  %84 = vmatprep.subr.mxu0 0.0
  %85 = vmatpush1.msra.mxu0 0.0
  %86 = vmatprep.subr.mxu0 0.0
  %87 = vmatpush1.msra.mxu0 0.0
  %88 = vmatprep.subr.mxu0 0.0
  %89 = vmatpush1.msra.mxu0 0.0
  %90 = vmatprep.subr.mxu0 0.0
  %91 = vmatpush1.msra.mxu0 0.0
  %92 = vmatprep.subr.mxu0 0.0
  %93 = vmatpush1.msra.mxu0 0.0
  %94 = vmatprep.subr.mxu0 0.0
  %95 = vmatpush1.msra.mxu0 0.0
  %96 = vmatprep.subr.mxu0 0.0
  %97 = vmatpush1.msra.mxu0 0.0
  %98 = vmatprep.subr.mxu0 0.0
  %99 = vmatpush1.msra.mxu0 0.0
  %100 = vmatprep.subr.mxu0 0.0
  %101 = vmatpush1.msra.mxu0 0.0
  %102 = vmatprep.subr.mxu0 0.0
  %103 = vmatpush1.msra.mxu0 0.0
  %104 = vmatprep.subr.mxu0 0.0
  %105 = vmatpush1.msra.mxu0 0.0
  %106 = vmatprep.subr.mxu0 0.0
  %107 = vmatpush1.msra.mxu0 0.0
  %108 = vmatprep.subr.mxu0 0.0
  %109 = vmatpush1.msra.mxu0 0.0
  %110 = vmatprep.subr.mxu0 0.0
  %111 = vmatpush1.msra.mxu0 0.0
  %112 = vmatprep.subr.mxu0 0.0
  %113 = vmatpush1.msra.mxu0 0.0
  %114 = vmatprep.mubr.f32.mxu0 0.0
  %115 = vmatmul.mubr.f32.gmra.mrb[0].mxu0 %v41
  %v116 = vpop.f32.mrb[0].mxu0
  %v117 = vadd.f32 %v37, %v116
  %v118 = vpop.f32.mrb[0].mxu0
  %119 = vmatprep.mubr.f32.mxu0 0.0
  %120 = vmatmul.mubr.f32.gmra.mrb[0].mxu0 %v44
  %v121 = vpop.f32.mrb[0].mxu0
  %v122 = vadd.f32 %v37, %v121
  %v123 = vpop.f32.mrb[0].mxu0
  %124 = vdwg.mxu0
  %v125 = vmul.f32 %v117, %v28
  %v126 = vmul.f32 %v122, %v28
  %v127 = vld [vmem:[%s2] sm:$0xff]
  %v128 = vld [vmem:[%s2 + $0x8] sm:$0xff]
  %v129 = vld [vmem:[%s2 + $0x10] sm:$0xff]
  %v130 = vld [vmem:[%s2 + $0x18] sm:$0xff]
  %v131 = vmul.f32 %v127, %v28
  %v132 = vmul.f32 %v128, %v28
  %v133 = vmul.f32 %v129, %v28
  %v134 = vmul.f32 %v130, %v28
  %vm135 = vcmask 261120
  %v137 = vsel %vm135, 0.0, 0
  %139 = vmatprep.subr.mxu0 0.0
  %140 = vmatpush1.msra.mxu0 %v131
  %141 = vmatprep.subr.mxu0 0.0
  %142 = vmatpush1.msra.mxu0 %v132
  %143 = vmatprep.subr.mxu0 0.0
  %144 = vmatpush1.msra.mxu0 %v133
  %145 = vmatprep.subr.mxu0 0.0
  %146 = vmatpush1.msra.mxu0 %v134
  %147 = vmatprep.subr.mxu0 0.0
  %148 = vmatpush1.msra.mxu0 0.0
  %149 = vmatprep.subr.mxu0 0.0
  %150 = vmatpush1.msra.mxu0 0.0
  %151 = vmatprep.subr.mxu0 0.0
  %152 = vmatpush1.msra.mxu0 0.0
  %153 = vmatprep.subr.mxu0 0.0
  %154 = vmatpush1.msra.mxu0 0.0
  %155 = vmatprep.subr.mxu0 0.0
  %156 = vmatpush1.msra.mxu0 0.0
  %157 = vmatprep.subr.mxu0 0.0
  %158 = vmatpush1.msra.mxu0 0.0
  %159 = vmatprep.subr.mxu0 0.0
  %160 = vmatpush1.msra.mxu0 0.0
  %161 = vmatprep.subr.mxu0 0.0
  %162 = vmatpush1.msra.mxu0 0.0
  %163 = vmatprep.subr.mxu0 0.0
  %164 = vmatpush1.msra.mxu0 0.0
  %165 = vmatprep.subr.mxu0 0.0
  %166 = vmatpush1.msra.mxu0 0.0
  %167 = vmatprep.subr.mxu0 0.0
  %168 = vmatpush1.msra.mxu0 0.0
  %169 = vmatprep.subr.mxu0 0.0
  %170 = vmatpush1.msra.mxu0 0.0
  %171 = vmatprep.subr.mxu0 0.0
  %172 = vmatpush1.msra.mxu0 0.0
  %173 = vmatprep.subr.mxu0 0.0
  %174 = vmatpush1.msra.mxu0 0.0
  %175 = vmatprep.subr.mxu0 0.0
  %176 = vmatpush1.msra.mxu0 0.0
  %177 = vmatprep.subr.mxu0 0.0
  %178 = vmatpush1.msra.mxu0 0.0
  %179 = vmatprep.subr.mxu0 0.0
  %180 = vmatpush1.msra.mxu0 0.0
  %181 = vmatprep.subr.mxu0 0.0
  %182 = vmatpush1.msra.mxu0 0.0
  %183 = vmatprep.subr.mxu0 0.0
  %184 = vmatpush1.msra.mxu0 0.0
  %185 = vmatprep.subr.mxu0 0.0
  %186 = vmatpush1.msra.mxu0 0.0
  %187 = vmatprep.subr.mxu0 0.0
  %188 = vmatpush1.msra.mxu0 0.0
  %189 = vmatprep.subr.mxu0 0.0
  %190 = vmatpush1.msra.mxu0 0.0
  %191 = vmatprep.subr.mxu0 0.0
  %192 = vmatpush1.msra.mxu0 0.0
  %193 = vmatprep.subr.mxu0 0.0
  %194 = vmatpush1.msra.mxu0 0.0
  %195 = vmatprep.subr.mxu0 0.0
  %196 = vmatpush1.msra.mxu0 0.0
  %197 = vmatprep.subr.mxu0 0.0
  %198 = vmatpush1.msra.mxu0 0.0
  %199 = vmatprep.subr.mxu0 0.0
  %200 = vmatpush1.msra.mxu0 0.0
  %201 = vmatprep.subr.mxu0 0.0
  %202 = vmatpush1.msra.mxu0 0.0
  %203 = vmatprep.mubr.f32.mxu0 0.0
  %204 = vmatmul.mubr.f32.gmra.mrb[0].mxu0 %v137
  %v205 = vpop.f32.mrb[0].mxu0
  %v206 = vadd.f32 0.0, %v205
  %v207 = vpop.f32.mrb[0].mxu0
  %208 = vdwg.mxu0
  %v210 = vrot.slane %v206, 1
  %v213 = vadd.f32 %v125, %v206
  %v214 = vadd.f32 %v126, %v210
  %v215 = vxor.u32 %v213, 2147483648
  %v216 = vxor.u32 %v214, 2147483648
  %v217 = vmul.f32 %v215, 1.442695
  %v218 = vpow.pop %v217
  %v219 = vmul.f32 %v216, 1.442695
  %v220 = vpow.pop %v219
  %v221 = vadd.f32 %v218, 1.0
  %v222 = vadd.f32 %v220, 1.0
  %v223 = vrcp.pop %v221
  %v224 = vmul.f32 1.0, %v223
  %v225 = vrcp.pop %v222
  %v226 = vmul.f32 1.0, %v225
  %v227 = vmul.f32 %v224, 2.0
  %v228 = vmul.f32 %v226, 2.0
  %v229 = vsub.f32 %v227, 1.0
  %v230 = vsub.f32 %v228, 1.0
  %v231 = vmul.f32 %v224, 0.0
  %v232 = vmul.f32 %v226, 0.0
  %235 = vrot.lane.b32.xlu0 %v229, 64
  %v236 = vpop.permute.xlu0 %235
  %237 = vrot.lane.b32.xlu0 %v230, 64
  %v238 = vpop.permute.xlu0 %237
  %v241 = vmul.f32 %v224, %v236
  %v242 = vmul.f32 %v226, %v238
  %245 = vrot.lane.b32.xlu0 %v241, 32
  %v246 = vpop.permute.xlu0 %245
  %247 = vrot.lane.b32.xlu0 %v242, 32
  %v248 = vpop.permute.xlu0 %247
  %v251 = vadd.f32 %v231, %v246
  %v252 = vadd.f32 %v232, %v248
  %v253 = vtanh.pop %v251
  %v254 = vtanh.pop %v252
  %257 = vrot.lane.b32.xlu0 %v253, 64
  %v258 = vpop.permute.xlu0 %257
  %259 = vrot.lane.b32.xlu0 %v254, 64
  %v260 = vpop.permute.xlu0 %259
  %v263 = vmul.f32 %v224, %v258
  %v264 = vmul.f32 %v226, %v260
  %v267 = vrot.slane %v264, 7
  %vm268 = vcmask 1041409
  %v269 = vsel %vm268, %v267, %v263
  %270 = vrot.lane.b32.xlu0 %v269, 32
  %v271 = vpop.permute.xlu0 %270
  %v272 = vsel %vm135, %v271, 0
  %274 = vmatprep.subr.mxu0 0.0
  %275 = vmatpush1.msra.mxu0 %v131
  %276 = vmatprep.subr.mxu0 0.0
  %277 = vmatpush1.msra.mxu0 %v132
  %278 = vmatprep.subr.mxu0 0.0
  %279 = vmatpush1.msra.mxu0 %v133
  %280 = vmatprep.subr.mxu0 0.0
  %281 = vmatpush1.msra.mxu0 %v134
  %282 = vmatprep.subr.mxu0 0.0
  %283 = vmatpush1.msra.mxu0 0.0
  %284 = vmatprep.subr.mxu0 0.0
  %285 = vmatpush1.msra.mxu0 0.0
  %286 = vmatprep.subr.mxu0 0.0
  %287 = vmatpush1.msra.mxu0 0.0
  %288 = vmatprep.subr.mxu0 0.0
  %289 = vmatpush1.msra.mxu0 0.0
  %290 = vmatprep.subr.mxu0 0.0
  %291 = vmatpush1.msra.mxu0 0.0
  %292 = vmatprep.subr.mxu0 0.0
  %293 = vmatpush1.msra.mxu0 0.0
  %294 = vmatprep.subr.mxu0 0.0
  %295 = vmatpush1.msra.mxu0 0.0
  %296 = vmatprep.subr.mxu0 0.0
  %297 = vmatpush1.msra.mxu0 0.0
  %298 = vmatprep.subr.mxu0 0.0
  %299 = vmatpush1.msra.mxu0 0.0
  %300 = vmatprep.subr.mxu0 0.0
  %301 = vmatpush1.msra.mxu0 0.0
  %302 = vmatprep.subr.mxu0 0.0
  %303 = vmatpush1.msra.mxu0 0.0
  %304 = vmatprep.subr.mxu0 0.0
  %305 = vmatpush1.msra.mxu0 0.0
  %306 = vmatprep.subr.mxu0 0.0
  %307 = vmatpush1.msra.mxu0 0.0
  %308 = vmatprep.subr.mxu0 0.0
  %309 = vmatpush1.msra.mxu0 0.0
  %310 = vmatprep.subr.mxu0 0.0
  %311 = vmatpush1.msra.mxu0 0.0
  %312 = vmatprep.subr.mxu0 0.0
  %313 = vmatpush1.msra.mxu0 0.0
  %314 = vmatprep.subr.mxu0 0.0
  %315 = vmatpush1.msra.mxu0 0.0
  %316 = vmatprep.subr.mxu0 0.0
  %317 = vmatpush1.msra.mxu0 0.0
  %318 = vmatprep.subr.mxu0 0.0
  %319 = vmatpush1.msra.mxu0 0.0
  %320 = vmatprep.subr.mxu0 0.0
  %321 = vmatpush1.msra.mxu0 0.0
  %322 = vmatprep.subr.mxu0 0.0
  %323 = vmatpush1.msra.mxu0 0.0
  %324 = vmatprep.subr.mxu0 0.0
  %325 = vmatpush1.msra.mxu0 0.0
  %326 = vmatprep.subr.mxu0 0.0
  %327 = vmatpush1.msra.mxu0 0.0
  %328 = vmatprep.subr.mxu0 0.0
  %329 = vmatpush1.msra.mxu0 0.0
  %330 = vmatprep.subr.mxu0 0.0
  %331 = vmatpush1.msra.mxu0 0.0
  %332 = vmatprep.subr.mxu0 0.0
  %333 = vmatpush1.msra.mxu0 0.0
  %334 = vmatprep.subr.mxu0 0.0
  %335 = vmatpush1.msra.mxu0 0.0
  %336 = vmatprep.subr.mxu0 0.0
  %337 = vmatpush1.msra.mxu0 0.0
  %338 = vmatprep.mubr.f32.mxu0 0.0
  %339 = vmatmul.mubr.f32.gmra.mrb[0].mxu0 %v272
  %v340 = vpop.f32.mrb[0].mxu0
  %v341 = vadd.f32 0.0, %v340
  %v342 = vpop.f32.mrb[0].mxu0
  %343 = vdwg.mxu0
  %v345 = vrot.slane %v341, 7
  %v348 = vadd.f32 %v125, %v345
  %v349 = vadd.f32 %v126, %v341
  %v350 = vxor.u32 %v348, 2147483648
  %v351 = vxor.u32 %v349, 2147483648
  %v352 = vmul.f32 %v350, 1.442695
  %v353 = vpow.pop %v352
  %v354 = vmul.f32 %v351, 1.442695
  %v355 = vpow.pop %v354
  %v356 = vadd.f32 %v353, 1.0
  %v357 = vadd.f32 %v355, 1.0
  %v358 = vrcp.pop %v356
  %v359 = vmul.f32 1.0, %v358
  %v360 = vrcp.pop %v357
  %v361 = vmul.f32 1.0, %v360
  %v362 = vmul.f32 %v359, 2.0
  %v363 = vmul.f32 %v361, 2.0
  %v364 = vsub.f32 %v362, 1.0
  %v365 = vsub.f32 %v363, 1.0
  %v368 = vrot.slane %v251, 7
  %v369 = vrot.slane %v252, 7
  %v372 = vmul.f32 %v359, %v368
  %v373 = vmul.f32 %v361, %v369
  %376 = vrot.lane.b32.xlu0 %v364, 64
  %v377 = vpop.permute.xlu0 %376
  %378 = vrot.lane.b32.xlu0 %v365, 64
  %v379 = vpop.permute.xlu0 %378
  %v382 = vmul.f32 %v359, %v377
  %v383 = vmul.f32 %v361, %v379
  %386 = vrot.lane.b32.xlu0 %v382, 32
  %v387 = vpop.permute.xlu0 %386
  %388 = vrot.lane.b32.xlu0 %v383, 32
  %v389 = vpop.permute.xlu0 %388
  %v392 = vadd.f32 %v372, %v387
  %v393 = vadd.f32 %v373, %v389
  %v394 = vtanh.pop %v392
  %v395 = vtanh.pop %v393
  %398 = vrot.lane.b32.xlu0 %v394, 64
  %v399 = vpop.permute.xlu0 %398
  %400 = vrot.lane.b32.xlu0 %v395, 64
  %v401 = vpop.permute.xlu0 %400
  %v404 = vmul.f32 %v359, %v399
  %v405 = vmul.f32 %v361, %v401
  %v408 = vrot.slane %v404, 1
  %v409 = vsel %vm268, %v405, %v408
  %410 = vrot.lane.b32.xlu0 %v409, 32
  %v411 = vpop.permute.xlu0 %410
  %v412 = vsel %vm135, %v411, 0
  %414 = vmatprep.subr.mxu0 0.0
  %415 = vmatpush1.msra.mxu0 %v131
  %416 = vmatprep.subr.mxu0 0.0
  %417 = vmatpush1.msra.mxu0 %v132
  %418 = vmatprep.subr.mxu0 0.0
  %419 = vmatpush1.msra.mxu0 %v133
  %420 = vmatprep.subr.mxu0 0.0
  %421 = vmatpush1.msra.mxu0 %v134
  %422 = vmatprep.subr.mxu0 0.0
  %423 = vmatpush1.msra.mxu0 0.0
  %424 = vmatprep.subr.mxu0 0.0
  %425 = vmatpush1.msra.mxu0 0.0
  %426 = vmatprep.subr.mxu0 0.0
  %427 = vmatpush1.msra.mxu0 0.0
  %428 = vmatprep.subr.mxu0 0.0
  %429 = vmatpush1.msra.mxu0 0.0
  %430 = vmatprep.subr.mxu0 0.0
  %431 = vmatpush1.msra.mxu0 0.0
  %432 = vmatprep.subr.mxu0 0.0
  %433 = vmatpush1.msra.mxu0 0.0
  %434 = vmatprep.subr.mxu0 0.0
  %435 = vmatpush1.msra.mxu0 0.0
  %436 = vmatprep.subr.mxu0 0.0
  %437 = vmatpush1.msra.mxu0 0.0
  %438 = vmatprep.subr.mxu0 0.0
  %439 = vmatpush1.msra.mxu0 0.0
  %440 = vmatprep.subr.mxu0 0.0
  %441 = vmatpush1.msra.mxu0 0.0
  %442 = vmatprep.subr.mxu0 0.0
  %443 = vmatpush1.msra.mxu0 0.0
  %444 = vmatprep.subr.mxu0 0.0
  %445 = vmatpush1.msra.mxu0 0.0
  %446 = vmatprep.subr.mxu0 0.0
  %447 = vmatpush1.msra.mxu0 0.0
  %448 = vmatprep.subr.mxu0 0.0
  %449 = vmatpush1.msra.mxu0 0.0
  %450 = vmatprep.subr.mxu0 0.0
  %451 = vmatpush1.msra.mxu0 0.0
  %452 = vmatprep.subr.mxu0 0.0
  %453 = vmatpush1.msra.mxu0 0.0
  %454 = vmatprep.subr.mxu0 0.0
  %455 = vmatpush1.msra.mxu0 0.0
  %456 = vmatprep.subr.mxu0 0.0
  %457 = vmatpush1.msra.mxu0 0.0
  %458 = vmatprep.subr.mxu0 0.0
  %459 = vmatpush1.msra.mxu0 0.0
  %460 = vmatprep.subr.mxu0 0.0
  %461 = vmatpush1.msra.mxu0 0.0
  %462 = vmatprep.subr.mxu0 0.0
  %463 = vmatpush1.msra.mxu0 0.0
  %464 = vmatprep.subr.mxu0 0.0
  %465 = vmatpush1.msra.mxu0 0.0
  %466 = vmatprep.subr.mxu0 0.0
  %467 = vmatpush1.msra.mxu0 0.0
  %468 = vmatprep.subr.mxu0 0.0
  %469 = vmatpush1.msra.mxu0 0.0
  %470 = vmatprep.subr.mxu0 0.0
  %471 = vmatpush1.msra.mxu0 0.0
  %472 = vmatprep.subr.mxu0 0.0
  %473 = vmatpush1.msra.mxu0 0.0
  %474 = vmatprep.subr.mxu0 0.0
  %475 = vmatpush1.msra.mxu0 0.0
  %476 = vmatprep.subr.mxu0 0.0
  %477 = vmatpush1.msra.mxu0 0.0
  %478 = vmatprep.mubr.f32.mxu0 0.0
  %479 = vmatmul.mubr.f32.gmra.mrb[0].mxu0 %v412
  %v480 = vpop.f32.mrb[0].mxu0
  %v481 = vadd.f32 0.0, %v480
  %v482 = vpop.f32.mrb[0].mxu0
  %483 = vdwg.mxu0
  %v485 = vrot.slane %v481, 6
  %v486 = vrot.slane %v481, 7
  %v489 = vadd.f32 %v125, %v485
  %v490 = vadd.f32 %v126, %v486
  %v491 = vxor.u32 %v489, 2147483648
  %v492 = vxor.u32 %v490, 2147483648
  %v493 = vmul.f32 %v491, 1.442695
  %v494 = vpow.pop %v493
  %v495 = vmul.f32 %v492, 1.442695
  %v496 = vpow.pop %v495
  %v497 = vadd.f32 %v494, 1.0
  %v498 = vadd.f32 %v496, 1.0
  %v499 = vrcp.pop %v497
  %v500 = vmul.f32 1.0, %v499
  %v501 = vrcp.pop %v498
  %v502 = vmul.f32 1.0, %v501
  %v503 = vmul.f32 %v500, 2.0
  %v504 = vmul.f32 %v502, 2.0
  %v505 = vsub.f32 %v503, 1.0
  %v506 = vsub.f32 %v504, 1.0
  %v509 = vrot.slane %v392, 7
  %v510 = vrot.slane %v393, 7
  %v513 = vmul.f32 %v500, %v509
  %v514 = vmul.f32 %v502, %v510
  %517 = vrot.lane.b32.xlu0 %v505, 64
  %v518 = vpop.permute.xlu0 %517
  %519 = vrot.lane.b32.xlu0 %v506, 64
  %v520 = vpop.permute.xlu0 %519
  %v523 = vmul.f32 %v500, %v518
  %v524 = vmul.f32 %v502, %v520
  %527 = vrot.lane.b32.xlu0 %v523, 32
  %v528 = vpop.permute.xlu0 %527
  %529 = vrot.lane.b32.xlu0 %v524, 32
  %v530 = vpop.permute.xlu0 %529
  %v533 = vadd.f32 %v513, %v528
  %v534 = vadd.f32 %v514, %v530
  %v535 = vtanh.pop %v533
  %v536 = vtanh.pop %v534
  %539 = vrot.lane.b32.xlu0 %v535, 64
  %v540 = vpop.permute.xlu0 %539
  %541 = vrot.lane.b32.xlu0 %v536, 64
  %v542 = vpop.permute.xlu0 %541
  %v545 = vmul.f32 %v500, %v540
  %v546 = vmul.f32 %v502, %v542
  %v549 = vrot.slane %v545, 2
  %v550 = vrot.slane %v546, 1
  %v551 = vsel %vm268, %v550, %v549
  %552 = vrot.lane.b32.xlu0 %v551, 32
  %v553 = vpop.permute.xlu0 %552
  %v554 = vsel %vm135, %v553, 0
  %556 = vmatprep.subr.mxu0 0.0
  %557 = vmatpush1.msra.mxu0 %v131
  %558 = vmatprep.subr.mxu0 0.0
  %559 = vmatpush1.msra.mxu0 %v132
  %560 = vmatprep.subr.mxu0 0.0
  %561 = vmatpush1.msra.mxu0 %v133
  %562 = vmatprep.subr.mxu0 0.0
  %563 = vmatpush1.msra.mxu0 %v134
  %564 = vmatprep.subr.mxu0 0.0
  %565 = vmatpush1.msra.mxu0 0.0
  %566 = vmatprep.subr.mxu0 0.0
  %567 = vmatpush1.msra.mxu0 0.0
  %568 = vmatprep.subr.mxu0 0.0
  %569 = vmatpush1.msra.mxu0 0.0
  %570 = vmatprep.subr.mxu0 0.0
  %571 = vmatpush1.msra.mxu0 0.0
  %572 = vmatprep.subr.mxu0 0.0
  %573 = vmatpush1.msra.mxu0 0.0
  %574 = vmatprep.subr.mxu0 0.0
  %575 = vmatpush1.msra.mxu0 0.0
  %576 = vmatprep.subr.mxu0 0.0
  %577 = vmatpush1.msra.mxu0 0.0
  %578 = vmatprep.subr.mxu0 0.0
  %579 = vmatpush1.msra.mxu0 0.0
  %580 = vmatprep.subr.mxu0 0.0
  %581 = vmatpush1.msra.mxu0 0.0
  %582 = vmatprep.subr.mxu0 0.0
  %583 = vmatpush1.msra.mxu0 0.0
  %584 = vmatprep.subr.mxu0 0.0
  %585 = vmatpush1.msra.mxu0 0.0
  %586 = vmatprep.subr.mxu0 0.0
  %587 = vmatpush1.msra.mxu0 0.0
  %588 = vmatprep.subr.mxu0 0.0
  %589 = vmatpush1.msra.mxu0 0.0
  %590 = vmatprep.subr.mxu0 0.0
  %591 = vmatpush1.msra.mxu0 0.0
  %592 = vmatprep.subr.mxu0 0.0
  %593 = vmatpush1.msra.mxu0 0.0
  %594 = vmatprep.subr.mxu0 0.0
  %595 = vmatpush1.msra.mxu0 0.0
  %596 = vmatprep.subr.mxu0 0.0
  %597 = vmatpush1.msra.mxu0 0.0
  %598 = vmatprep.subr.mxu0 0.0
  %599 = vmatpush1.msra.mxu0 0.0
  %600 = vmatprep.subr.mxu0 0.0
  %601 = vmatpush1.msra.mxu0 0.0
  %602 = vmatprep.subr.mxu0 0.0
  %603 = vmatpush1.msra.mxu0 0.0
  %604 = vmatprep.subr.mxu0 0.0
  %605 = vmatpush1.msra.mxu0 0.0
  %606 = vmatprep.subr.mxu0 0.0
  %607 = vmatpush1.msra.mxu0 0.0
  %608 = vmatprep.subr.mxu0 0.0
  %609 = vmatpush1.msra.mxu0 0.0
  %610 = vmatprep.subr.mxu0 0.0
  %611 = vmatpush1.msra.mxu0 0.0
  %612 = vmatprep.subr.mxu0 0.0
  %613 = vmatpush1.msra.mxu0 0.0
  %614 = vmatprep.subr.mxu0 0.0
  %615 = vmatpush1.msra.mxu0 0.0
  %616 = vmatprep.subr.mxu0 0.0
  %617 = vmatpush1.msra.mxu0 0.0
  %618 = vmatprep.subr.mxu0 0.0
  %619 = vmatpush1.msra.mxu0 0.0
  %620 = vmatprep.mubr.f32.mxu0 0.0
  %621 = vmatmul.mubr.f32.gmra.mrb[0].mxu0 %v554
  %v622 = vpop.f32.mrb[0].mxu0
  %v623 = vadd.f32 0.0, %v622
  %v624 = vpop.f32.mrb[0].mxu0
  %625 = vdwg.mxu0
  %v627 = vrot.slane %v623, 5
  %v628 = vrot.slane %v623, 6
  %v631 = vadd.f32 %v125, %v627
  %v632 = vadd.f32 %v126, %v628
  %v633 = vxor.u32 %v631, 2147483648
  %v634 = vxor.u32 %v632, 2147483648
  %v635 = vmul.f32 %v633, 1.442695
  %v636 = vpow.pop %v635
  %v637 = vmul.f32 %v634, 1.442695
  %v638 = vpow.pop %v637
  %v639 = vadd.f32 %v636, 1.0
  %v640 = vadd.f32 %v638, 1.0
  %v641 = vrcp.pop %v639
  %v642 = vmul.f32 1.0, %v641
  %v643 = vrcp.pop %v640
  %v644 = vmul.f32 1.0, %v643
  %v645 = vmul.f32 %v642, 2.0
  %v646 = vmul.f32 %v644, 2.0
  %v647 = vsub.f32 %v645, 1.0
  %v648 = vsub.f32 %v646, 1.0
  %v651 = vrot.slane %v533, 7
  %v652 = vrot.slane %v534, 7
  %v655 = vmul.f32 %v642, %v651
  %v656 = vmul.f32 %v644, %v652
  %659 = vrot.lane.b32.xlu0 %v647, 64
  %v660 = vpop.permute.xlu0 %659
  %661 = vrot.lane.b32.xlu0 %v648, 64
  %v662 = vpop.permute.xlu0 %661
  %v665 = vmul.f32 %v642, %v660
  %v666 = vmul.f32 %v644, %v662
  %669 = vrot.lane.b32.xlu0 %v665, 32
  %v670 = vpop.permute.xlu0 %669
  %671 = vrot.lane.b32.xlu0 %v666, 32
  %v672 = vpop.permute.xlu0 %671
  %v675 = vadd.f32 %v655, %v670
  %v676 = vadd.f32 %v656, %v672
  %v677 = vtanh.pop %v675
  %v678 = vtanh.pop %v676
  %681 = vrot.lane.b32.xlu0 %v677, 64
  %v682 = vpop.permute.xlu0 %681
  %683 = vrot.lane.b32.xlu0 %v678, 64
  %v684 = vpop.permute.xlu0 %683
  %v687 = vmul.f32 %v642, %v682
  %v688 = vmul.f32 %v644, %v684
  %v691 = vrot.slane %v687, 3
  %v692 = vrot.slane %v688, 2
  %v693 = vsel %vm268, %v692, %v691
  %694 = vrot.lane.b32.xlu0 %v693, 32
  %v695 = vpop.permute.xlu0 %694
  %v696 = vsel %vm135, %v695, 0
  %698 = vmatprep.subr.mxu0 0.0
  %699 = vmatpush1.msra.mxu0 %v131
  %700 = vmatprep.subr.mxu0 0.0
  %701 = vmatpush1.msra.mxu0 %v132
  %702 = vmatprep.subr.mxu0 0.0
  %703 = vmatpush1.msra.mxu0 %v133
  %704 = vmatprep.subr.mxu0 0.0
  %705 = vmatpush1.msra.mxu0 %v134
  %706 = vmatprep.subr.mxu0 0.0
  %707 = vmatpush1.msra.mxu0 0.0
  %708 = vmatprep.subr.mxu0 0.0
  %709 = vmatpush1.msra.mxu0 0.0
  %710 = vmatprep.subr.mxu0 0.0
  %711 = vmatpush1.msra.mxu0 0.0
  %712 = vmatprep.subr.mxu0 0.0
  %713 = vmatpush1.msra.mxu0 0.0
  %714 = vmatprep.subr.mxu0 0.0
  %715 = vmatpush1.msra.mxu0 0.0
  %716 = vmatprep.subr.mxu0 0.0
  %717 = vmatpush1.msra.mxu0 0.0
  %718 = vmatprep.subr.mxu0 0.0
  %719 = vmatpush1.msra.mxu0 0.0
  %720 = vmatprep.subr.mxu0 0.0
  %721 = vmatpush1.msra.mxu0 0.0
  %722 = vmatprep.subr.mxu0 0.0
  %723 = vmatpush1.msra.mxu0 0.0
  %724 = vmatprep.subr.mxu0 0.0
  %725 = vmatpush1.msra.mxu0 0.0
  %726 = vmatprep.subr.mxu0 0.0
  %727 = vmatpush1.msra.mxu0 0.0
  %728 = vmatprep.subr.mxu0 0.0
  %729 = vmatpush1.msra.mxu0 0.0
  %730 = vmatprep.subr.mxu0 0.0
  %731 = vmatpush1.msra.mxu0 0.0
  %732 = vmatprep.subr.mxu0 0.0
  %733 = vmatpush1.msra.mxu0 0.0
  %734 = vmatprep.subr.mxu0 0.0
  %735 = vmatpush1.msra.mxu0 0.0
  %736 = vmatprep.subr.mxu0 0.0
  %737 = vmatpush1.msra.mxu0 0.0
  %738 = vmatprep.subr.mxu0 0.0
  %739 = vmatpush1.msra.mxu0 0.0
  %740 = vmatprep.subr.mxu0 0.0
  %741 = vmatpush1.msra.mxu0 0.0
  %742 = vmatprep.subr.mxu0 0.0
  %743 = vmatpush1.msra.mxu0 0.0
  %744 = vmatprep.subr.mxu0 0.0
  %745 = vmatpush1.msra.mxu0 0.0
  %746 = vmatprep.subr.mxu0 0.0
  %747 = vmatpush1.msra.mxu0 0.0
  %748 = vmatprep.subr.mxu0 0.0
  %749 = vmatpush1.msra.mxu0 0.0
  %750 = vmatprep.subr.mxu0 0.0
  %751 = vmatpush1.msra.mxu0 0.0
  %752 = vmatprep.subr.mxu0 0.0
  %753 = vmatpush1.msra.mxu0 0.0
  %754 = vmatprep.subr.mxu0 0.0
  %755 = vmatpush1.msra.mxu0 0.0
  %756 = vmatprep.subr.mxu0 0.0
  %757 = vmatpush1.msra.mxu0 0.0
  %758 = vmatprep.subr.mxu0 0.0
  %759 = vmatpush1.msra.mxu0 0.0
  %760 = vmatprep.subr.mxu0 0.0
  %761 = vmatpush1.msra.mxu0 0.0
  %762 = vmatprep.mubr.f32.mxu0 0.0
  %763 = vmatmul.mubr.f32.gmra.mrb[0].mxu0 %v696
  %v764 = vpop.f32.mrb[0].mxu0
  %v765 = vadd.f32 0.0, %v764
  %v766 = vpop.f32.mrb[0].mxu0
  %767 = vdwg.mxu0
  %v769 = vrot.slane %v765, 4
  %v770 = vrot.slane %v765, 5
  %v773 = vadd.f32 %v125, %v769
  %v774 = vadd.f32 %v126, %v770
  %v775 = vxor.u32 %v773, 2147483648
  %v776 = vxor.u32 %v774, 2147483648
  %v777 = vmul.f32 %v775, 1.442695
  %v778 = vpow.pop %v777
  %v779 = vmul.f32 %v776, 1.442695
  %v780 = vpow.pop %v779
  %v781 = vadd.f32 %v778, 1.0
  %v782 = vadd.f32 %v780, 1.0
  %v783 = vrcp.pop %v781
  %v784 = vmul.f32 1.0, %v783
  %v785 = vrcp.pop %v782
  %v786 = vmul.f32 1.0, %v785
  %v787 = vmul.f32 %v784, 2.0
  %v788 = vmul.f32 %v786, 2.0
  %v789 = vsub.f32 %v787, 1.0
  %v790 = vsub.f32 %v788, 1.0
  %v793 = vrot.slane %v675, 7
  %v794 = vrot.slane %v676, 7
  %v797 = vmul.f32 %v784, %v793
  %v798 = vmul.f32 %v786, %v794
  %801 = vrot.lane.b32.xlu0 %v789, 64
  %v802 = vpop.permute.xlu0 %801
  %803 = vrot.lane.b32.xlu0 %v790, 64
  %v804 = vpop.permute.xlu0 %803
  %v807 = vmul.f32 %v784, %v802
  %v808 = vmul.f32 %v786, %v804
  %811 = vrot.lane.b32.xlu0 %v807, 32
  %v812 = vpop.permute.xlu0 %811
  %813 = vrot.lane.b32.xlu0 %v808, 32
  %v814 = vpop.permute.xlu0 %813
  %v817 = vadd.f32 %v797, %v812
  %v818 = vadd.f32 %v798, %v814
  %v819 = vtanh.pop %v817
  %v820 = vtanh.pop %v818
  %823 = vrot.lane.b32.xlu0 %v819, 64
  %v824 = vpop.permute.xlu0 %823
  %825 = vrot.lane.b32.xlu0 %v820, 64
  %v826 = vpop.permute.xlu0 %825
  %v829 = vmul.f32 %v784, %v824
  %v830 = vmul.f32 %v786, %v826
  %v833 = vrot.slane %v829, 4
  %v834 = vrot.slane %v830, 3
  %v835 = vsel %vm268, %v834, %v833
  %836 = vrot.lane.b32.xlu0 %v835, 32
  %v837 = vpop.permute.xlu0 %836
  %v838 = vsel %vm135, %v837, 0
  %840 = vmatprep.subr.mxu0 0.0
  %841 = vmatpush1.msra.mxu0 %v131
  %842 = vmatprep.subr.mxu0 0.0
  %843 = vmatpush1.msra.mxu0 %v132
  %844 = vmatprep.subr.mxu0 0.0
  %845 = vmatpush1.msra.mxu0 %v133
  %846 = vmatprep.subr.mxu0 0.0
  %847 = vmatpush1.msra.mxu0 %v134
  %848 = vmatprep.subr.mxu0 0.0
  %849 = vmatpush1.msra.mxu0 0.0
  %850 = vmatprep.subr.mxu0 0.0
  %851 = vmatpush1.msra.mxu0 0.0
  %852 = vmatprep.subr.mxu0 0.0
  %853 = vmatpush1.msra.mxu0 0.0
  %854 = vmatprep.subr.mxu0 0.0
  %855 = vmatpush1.msra.mxu0 0.0
  %856 = vmatprep.subr.mxu0 0.0
  %857 = vmatpush1.msra.mxu0 0.0
  %858 = vmatprep.subr.mxu0 0.0
  %859 = vmatpush1.msra.mxu0 0.0
  %860 = vmatprep.subr.mxu0 0.0
  %861 = vmatpush1.msra.mxu0 0.0
  %862 = vmatprep.subr.mxu0 0.0
  %863 = vmatpush1.msra.mxu0 0.0
  %864 = vmatprep.subr.mxu0 0.0
  %865 = vmatpush1.msra.mxu0 0.0
  %866 = vmatprep.subr.mxu0 0.0
  %867 = vmatpush1.msra.mxu0 0.0
  %868 = vmatprep.subr.mxu0 0.0
  %869 = vmatpush1.msra.mxu0 0.0
  %870 = vmatprep.subr.mxu0 0.0
  %871 = vmatpush1.msra.mxu0 0.0
  %872 = vmatprep.subr.mxu0 0.0
  %873 = vmatpush1.msra.mxu0 0.0
  %874 = vmatprep.subr.mxu0 0.0
  %875 = vmatpush1.msra.mxu0 0.0
  %876 = vmatprep.subr.mxu0 0.0
  %877 = vmatpush1.msra.mxu0 0.0
  %878 = vmatprep.subr.mxu0 0.0
  %879 = vmatpush1.msra.mxu0 0.0
  %880 = vmatprep.subr.mxu0 0.0
  %881 = vmatpush1.msra.mxu0 0.0
  %882 = vmatprep.subr.mxu0 0.0
  %883 = vmatpush1.msra.mxu0 0.0
  %884 = vmatprep.subr.mxu0 0.0
  %885 = vmatpush1.msra.mxu0 0.0
  %886 = vmatprep.subr.mxu0 0.0
  %887 = vmatpush1.msra.mxu0 0.0
  %888 = vmatprep.subr.mxu0 0.0
  %889 = vmatpush1.msra.mxu0 0.0
  %890 = vmatprep.subr.mxu0 0.0
  %891 = vmatpush1.msra.mxu0 0.0
  %892 = vmatprep.subr.mxu0 0.0
  %893 = vmatpush1.msra.mxu0 0.0
  %894 = vmatprep.subr.mxu0 0.0
  %895 = vmatpush1.msra.mxu0 0.0
  %896 = vmatprep.subr.mxu0 0.0
  %897 = vmatpush1.msra.mxu0 0.0
  %898 = vmatprep.subr.mxu0 0.0
  %899 = vmatpush1.msra.mxu0 0.0
  %900 = vmatprep.subr.mxu0 0.0
  %901 = vmatpush1.msra.mxu0 0.0
  %902 = vmatprep.subr.mxu0 0.0
  %903 = vmatpush1.msra.mxu0 0.0
  %904 = vmatprep.mubr.f32.mxu0 0.0
  %905 = vmatmul.mubr.f32.gmra.mrb[0].mxu0 %v838
  %v906 = vpop.f32.mrb[0].mxu0
  %v907 = vadd.f32 0.0, %v906
  %v908 = vpop.f32.mrb[0].mxu0
  %909 = vdwg.mxu0
  %v911 = vrot.slane %v907, 3
  %v912 = vrot.slane %v907, 4
  %v915 = vadd.f32 %v125, %v911
  %v916 = vadd.f32 %v126, %v912
  %v917 = vxor.u32 %v915, 2147483648
  %v918 = vxor.u32 %v916, 2147483648
  %v919 = vmul.f32 %v917, 1.442695
  %v920 = vpow.pop %v919
  %v921 = vmul.f32 %v918, 1.442695
  %v922 = vpow.pop %v921
  %v923 = vadd.f32 %v920, 1.0
  %v924 = vadd.f32 %v922, 1.0
  %v925 = vrcp.pop %v923
  %v926 = vmul.f32 1.0, %v925
  %v927 = vrcp.pop %v924
  %v928 = vmul.f32 1.0, %v927
  %v929 = vmul.f32 %v926, 2.0
  %v930 = vmul.f32 %v928, 2.0
  %v931 = vsub.f32 %v929, 1.0
  %v932 = vsub.f32 %v930, 1.0
  %v935 = vrot.slane %v817, 7
  %v936 = vrot.slane %v818, 7
  %v939 = vmul.f32 %v926, %v935
  %v940 = vmul.f32 %v928, %v936
  %943 = vrot.lane.b32.xlu0 %v931, 64
  %v944 = vpop.permute.xlu0 %943
  %945 = vrot.lane.b32.xlu0 %v932, 64
  %v946 = vpop.permute.xlu0 %945
  %v949 = vmul.f32 %v926, %v944
  %v950 = vmul.f32 %v928, %v946
  %953 = vrot.lane.b32.xlu0 %v949, 32
  %v954 = vpop.permute.xlu0 %953
  %955 = vrot.lane.b32.xlu0 %v950, 32
  %v956 = vpop.permute.xlu0 %955
  %v959 = vadd.f32 %v939, %v954
  %v960 = vadd.f32 %v940, %v956
  %v961 = vtanh.pop %v959
  %v962 = vtanh.pop %v960
  %965 = vrot.lane.b32.xlu0 %v961, 64
  %v966 = vpop.permute.xlu0 %965
  %967 = vrot.lane.b32.xlu0 %v962, 64
  %v968 = vpop.permute.xlu0 %967
  %v971 = vmul.f32 %v926, %v966
  %v972 = vmul.f32 %v928, %v968
  %v975 = vrot.slane %v971, 5
  %v976 = vrot.slane %v972, 4
  %v977 = vsel %vm268, %v976, %v975
  %978 = vrot.lane.b32.xlu0 %v977, 32
  %v979 = vpop.permute.xlu0 %978
  %v980 = vsel %vm135, %v979, 0
  %982 = vmatprep.subr.mxu0 0.0
  %983 = vmatpush1.msra.mxu0 %v131
  %984 = vmatprep.subr.mxu0 0.0
  %985 = vmatpush1.msra.mxu0 %v132
  %986 = vmatprep.subr.mxu0 0.0
  %987 = vmatpush1.msra.mxu0 %v133
  %988 = vmatprep.subr.mxu0 0.0
  %989 = vmatpush1.msra.mxu0 %v134
  %990 = vmatprep.subr.mxu0 0.0
  %991 = vmatpush1.msra.mxu0 0.0
  %992 = vmatprep.subr.mxu0 0.0
  %993 = vmatpush1.msra.mxu0 0.0
  %994 = vmatprep.subr.mxu0 0.0
  %995 = vmatpush1.msra.mxu0 0.0
  %996 = vmatprep.subr.mxu0 0.0
  %997 = vmatpush1.msra.mxu0 0.0
  %998 = vmatprep.subr.mxu0 0.0
  %999 = vmatpush1.msra.mxu0 0.0
  %1000 = vmatprep.subr.mxu0 0.0
  %1001 = vmatpush1.msra.mxu0 0.0
  %1002 = vmatprep.subr.mxu0 0.0
  %1003 = vmatpush1.msra.mxu0 0.0
  %1004 = vmatprep.subr.mxu0 0.0
  %1005 = vmatpush1.msra.mxu0 0.0
  %1006 = vmatprep.subr.mxu0 0.0
  %1007 = vmatpush1.msra.mxu0 0.0
  %1008 = vmatprep.subr.mxu0 0.0
  %1009 = vmatpush1.msra.mxu0 0.0
  %1010 = vmatprep.subr.mxu0 0.0
  %1011 = vmatpush1.msra.mxu0 0.0
  %1012 = vmatprep.subr.mxu0 0.0
  %1013 = vmatpush1.msra.mxu0 0.0
  %1014 = vmatprep.subr.mxu0 0.0
  %1015 = vmatpush1.msra.mxu0 0.0
  %1016 = vmatprep.subr.mxu0 0.0
  %1017 = vmatpush1.msra.mxu0 0.0
  %1018 = vmatprep.subr.mxu0 0.0
  %1019 = vmatpush1.msra.mxu0 0.0
  %1020 = vmatprep.subr.mxu0 0.0
  %1021 = vmatpush1.msra.mxu0 0.0
  %1022 = vmatprep.subr.mxu0 0.0
  %1023 = vmatpush1.msra.mxu0 0.0
  %1024 = vmatprep.subr.mxu0 0.0
  %1025 = vmatpush1.msra.mxu0 0.0
  %1026 = vmatprep.subr.mxu0 0.0
  %1027 = vmatpush1.msra.mxu0 0.0
  %1028 = vmatprep.subr.mxu0 0.0
  %1029 = vmatpush1.msra.mxu0 0.0
  %1030 = vmatprep.subr.mxu0 0.0
  %1031 = vmatpush1.msra.mxu0 0.0
  %1032 = vmatprep.subr.mxu0 0.0
  %1033 = vmatpush1.msra.mxu0 0.0
  %1034 = vmatprep.subr.mxu0 0.0
  %1035 = vmatpush1.msra.mxu0 0.0
  %1036 = vmatprep.subr.mxu0 0.0
  %1037 = vmatpush1.msra.mxu0 0.0
  %1038 = vmatprep.subr.mxu0 0.0
  %1039 = vmatpush1.msra.mxu0 0.0
  %1040 = vmatprep.subr.mxu0 0.0
  %1041 = vmatpush1.msra.mxu0 0.0
  %1042 = vmatprep.subr.mxu0 0.0
  %1043 = vmatpush1.msra.mxu0 0.0
  %1044 = vmatprep.subr.mxu0 0.0
  %1045 = vmatpush1.msra.mxu0 0.0
  %1046 = vmatprep.mubr.f32.mxu0 0.0
  %1047 = vmatmul.mubr.f32.gmra.mrb[0].mxu0 %v980
  %v1048 = vpop.f32.mrb[0].mxu0
  %v1049 = vadd.f32 0.0, %v1048
  %v1050 = vpop.f32.mrb[0].mxu0
  %1051 = vdwg.mxu0
  %v1053 = vrot.slane %v1049, 2
  %v1054 = vrot.slane %v1049, 3
  %v1057 = vadd.f32 %v125, %v1053
  %v1058 = vadd.f32 %v126, %v1054
  %v1059 = vxor.u32 %v1057, 2147483648
  %v1060 = vxor.u32 %v1058, 2147483648
  %v1061 = vmul.f32 %v1059, 1.442695
  %v1062 = vpow.pop %v1061
  %v1063 = vmul.f32 %v1060, 1.442695
  %v1064 = vpow.pop %v1063
  %v1065 = vadd.f32 %v1062, 1.0
  %v1066 = vadd.f32 %v1064, 1.0
  %v1067 = vrcp.pop %v1065
  %v1068 = vmul.f32 1.0, %v1067
  %v1069 = vrcp.pop %v1066
  %v1070 = vmul.f32 1.0, %v1069
  %v1071 = vmul.f32 %v1068, 2.0
  %v1072 = vmul.f32 %v1070, 2.0
  %v1073 = vsub.f32 %v1071, 1.0
  %v1074 = vsub.f32 %v1072, 1.0
  %v1077 = vrot.slane %v959, 7
  %v1078 = vrot.slane %v960, 7
  %v1081 = vmul.f32 %v1068, %v1077
  %v1082 = vmul.f32 %v1070, %v1078
  %1085 = vrot.lane.b32.xlu0 %v1073, 64
  %v1086 = vpop.permute.xlu0 %1085
  %1087 = vrot.lane.b32.xlu0 %v1074, 64
  %v1088 = vpop.permute.xlu0 %1087
  %v1091 = vmul.f32 %v1068, %v1086
  %v1092 = vmul.f32 %v1070, %v1088
  %1095 = vrot.lane.b32.xlu0 %v1091, 32
  %v1096 = vpop.permute.xlu0 %1095
  %1097 = vrot.lane.b32.xlu0 %v1092, 32
  %v1098 = vpop.permute.xlu0 %1097
  %v1101 = vadd.f32 %v1081, %v1096
  %v1102 = vadd.f32 %v1082, %v1098
  %v1103 = vtanh.pop %v1101
  %v1104 = vtanh.pop %v1102
  %1107 = vrot.lane.b32.xlu0 %v1103, 64
  %v1108 = vpop.permute.xlu0 %1107
  %1109 = vrot.lane.b32.xlu0 %v1104, 64
  %v1110 = vpop.permute.xlu0 %1109
  %v1113 = vmul.f32 %v1068, %v1108
  %v1114 = vmul.f32 %v1070, %v1110
  %v1117 = vrot.slane %v1113, 6
  %v1118 = vrot.slane %v1114, 5
  %v1119 = vsel %vm268, %v1118, %v1117
  %1120 = vrot.lane.b32.xlu0 %v1119, 32
  %v1121 = vpop.permute.xlu0 %1120
  %v1122 = vsel %vm135, %v1121, 0
  %1124 = vmatprep.subr.mxu0 0.0
  %1125 = vmatpush1.msra.mxu0 %v131
  %1126 = vmatprep.subr.mxu0 0.0
  %1127 = vmatpush1.msra.mxu0 %v132
  %1128 = vmatprep.subr.mxu0 0.0
  %1129 = vmatpush1.msra.mxu0 %v133
  %1130 = vmatprep.subr.mxu0 0.0
  %1131 = vmatpush1.msra.mxu0 %v134
  %1132 = vmatprep.subr.mxu0 0.0
  %1133 = vmatpush1.msra.mxu0 0.0
  %1134 = vmatprep.subr.mxu0 0.0
  %1135 = vmatpush1.msra.mxu0 0.0
  %1136 = vmatprep.subr.mxu0 0.0
  %1137 = vmatpush1.msra.mxu0 0.0
  %1138 = vmatprep.subr.mxu0 0.0
  %1139 = vmatpush1.msra.mxu0 0.0
  %1140 = vmatprep.subr.mxu0 0.0
  %1141 = vmatpush1.msra.mxu0 0.0
  %1142 = vmatprep.subr.mxu0 0.0
  %1143 = vmatpush1.msra.mxu0 0.0
  %1144 = vmatprep.subr.mxu0 0.0
  %1145 = vmatpush1.msra.mxu0 0.0
  %1146 = vmatprep.subr.mxu0 0.0
  %1147 = vmatpush1.msra.mxu0 0.0
  %1148 = vmatprep.subr.mxu0 0.0
  %1149 = vmatpush1.msra.mxu0 0.0
  %1150 = vmatprep.subr.mxu0 0.0
  %1151 = vmatpush1.msra.mxu0 0.0
  %1152 = vmatprep.subr.mxu0 0.0
  %1153 = vmatpush1.msra.mxu0 0.0
  %1154 = vmatprep.subr.mxu0 0.0
  %1155 = vmatpush1.msra.mxu0 0.0
  %1156 = vmatprep.subr.mxu0 0.0
  %1157 = vmatpush1.msra.mxu0 0.0
  %1158 = vmatprep.subr.mxu0 0.0
  %1159 = vmatpush1.msra.mxu0 0.0
  %1160 = vmatprep.subr.mxu0 0.0
  %1161 = vmatpush1.msra.mxu0 0.0
  %1162 = vmatprep.subr.mxu0 0.0
  %1163 = vmatpush1.msra.mxu0 0.0
  %1164 = vmatprep.subr.mxu0 0.0
  %1165 = vmatpush1.msra.mxu0 0.0
  %1166 = vmatprep.subr.mxu0 0.0
  %1167 = vmatpush1.msra.mxu0 0.0
  %1168 = vmatprep.subr.mxu0 0.0
  %1169 = vmatpush1.msra.mxu0 0.0
  %1170 = vmatprep.subr.mxu0 0.0
  %1171 = vmatpush1.msra.mxu0 0.0
  %1172 = vmatprep.subr.mxu0 0.0
  %1173 = vmatpush1.msra.mxu0 0.0
  %1174 = vmatprep.subr.mxu0 0.0
  %1175 = vmatpush1.msra.mxu0 0.0
  %1176 = vmatprep.subr.mxu0 0.0
  %1177 = vmatpush1.msra.mxu0 0.0
  %1178 = vmatprep.subr.mxu0 0.0
  %1179 = vmatpush1.msra.mxu0 0.0
  %1180 = vmatprep.subr.mxu0 0.0
  %1181 = vmatpush1.msra.mxu0 0.0
  %1182 = vmatprep.subr.mxu0 0.0
  %1183 = vmatpush1.msra.mxu0 0.0
  %1184 = vmatprep.subr.mxu0 0.0
  %1185 = vmatpush1.msra.mxu0 0.0
  %1186 = vmatprep.subr.mxu0 0.0
  %1187 = vmatpush1.msra.mxu0 0.0
  %1188 = vmatprep.mubr.f32.mxu0 0.0
  %1189 = vmatmul.mubr.f32.gmra.mrb[0].mxu0 %v1122
  %v1190 = vpop.f32.mrb[0].mxu0
  %v1191 = vadd.f32 0.0, %v1190
  %v1192 = vpop.f32.mrb[0].mxu0
  %1193 = vdwg.mxu0
  %v1195 = vrot.slane %v1191, 1
  %v1196 = vrot.slane %v1191, 2
  %v1199 = vadd.f32 %v125, %v1195
  %v1200 = vadd.f32 %v126, %v1196
  %v1201 = vxor.u32 %v1199, 2147483648
  %v1202 = vxor.u32 %v1200, 2147483648
  %v1203 = vmul.f32 %v1201, 1.442695
  %v1204 = vpow.pop %v1203
  %v1205 = vmul.f32 %v1202, 1.442695
  %v1206 = vpow.pop %v1205
  %v1207 = vadd.f32 %v1204, 1.0
  %v1208 = vadd.f32 %v1206, 1.0
  %v1209 = vrcp.pop %v1207
  %v1210 = vmul.f32 1.0, %v1209
  %v1211 = vrcp.pop %v1208
  %v1212 = vmul.f32 1.0, %v1211
  %v1213 = vmul.f32 %v1210, 2.0
  %v1214 = vmul.f32 %v1212, 2.0
  %v1215 = vsub.f32 %v1213, 1.0
  %v1216 = vsub.f32 %v1214, 1.0
  %v1219 = vrot.slane %v1101, 7
  %v1220 = vrot.slane %v1102, 7
  %v1223 = vmul.f32 %v1210, %v1219
  %v1224 = vmul.f32 %v1212, %v1220
  %1227 = vrot.lane.b32.xlu0 %v1215, 64
  %v1228 = vpop.permute.xlu0 %1227
  %1229 = vrot.lane.b32.xlu0 %v1216, 64
  %v1230 = vpop.permute.xlu0 %1229
  %v1233 = vmul.f32 %v1210, %v1228
  %v1234 = vmul.f32 %v1212, %v1230
  %1237 = vrot.lane.b32.xlu0 %v1233, 32
  %v1238 = vpop.permute.xlu0 %1237
  %1239 = vrot.lane.b32.xlu0 %v1234, 32
  %v1240 = vpop.permute.xlu0 %1239
  %v1243 = vadd.f32 %v1223, %v1238
  %v1244 = vadd.f32 %v1224, %v1240
  %v1245 = vtanh.pop %v1243
  %v1246 = vtanh.pop %v1244
  %1249 = vrot.lane.b32.xlu0 %v1245, 64
  %v1250 = vpop.permute.xlu0 %1249
  %1251 = vrot.lane.b32.xlu0 %v1246, 64
  %v1252 = vpop.permute.xlu0 %1251
  %v1255 = vmul.f32 %v1210, %v1250
  %v1256 = vmul.f32 %v1212, %v1252
  %vm1257 = vcmask 1040384
  %v1258 = vsel %vm1257, %v263, %v404
  %vm1259 = vcmask 1041408
  %v1260 = vsel %vm1259, %v1258, %v545
  %vm1261 = vcmask 1042432
  %v1262 = vsel %vm1261, %v1260, %v687
  %v1263 = vsel %vm46, %v1262, %v829
  %vm1264 = vcmask 1044480
  %v1265 = vsel %vm1264, %v1263, %v971
  %vm1266 = vcmask 1045504
  %v1267 = vsel %vm1266, %v1265, %v1113
  %vm1268 = vcmask 1046528
  %v1269 = vsel %vm1268, %v1267, %v1255
  %v1270 = vsel %vm1257, %v264, %v405
  %v1271 = vsel %vm1259, %v1270, %v546
  %v1272 = vsel %vm1261, %v1271, %v688
  %v1273 = vsel %vm46, %v1272, %v830
  %v1274 = vsel %vm1264, %v1273, %v972
  %v1275 = vsel %vm1266, %v1274, %v1114
  %v1276 = vsel %vm1268, %v1275, %v1256
  %v1277 = vld [vmem:[%s4] sm:$0xff]
  %v1278 = vld [vmem:[%s4 + $0x8] sm:$0xff]
  %v1279 = vld [vmem:[%s4 + $0x10] sm:$0xff]
  %v1280 = vld [vmem:[%s4 + $0x18] sm:$0xff]
  %v1281 = vld [vmem:[%s5] sm:$0x1]
  %v1283 = vlaneseq
  %v1284 = vshrl.u32 %v1283, 7
  %v1285 = vsub.s32 0, %v1284
  %v1286 = vrot.slane %v1281, %v1285
  %1290 = vrot.lane.b32.xlu0 %v1269, 32
  %v1291 = vpop.permute.xlu0 %1290
  %1292 = vrot.lane.b32.xlu0 %v1276, 32
  %v1293 = vpop.permute.xlu0 %1292
  %v1294 = vsel %vm135, %v1291, 0
  %v1296 = vsel %vm135, %v1293, 0
  %1298 = vmatprep.subr.mxu0 0.0
  %1299 = vmatpush1.msra.mxu0 %v1277
  %1300 = vmatprep.subr.mxu0 0.0
  %1301 = vmatpush1.msra.mxu0 %v1278
  %1302 = vmatprep.subr.mxu0 0.0
  %1303 = vmatpush1.msra.mxu0 %v1279
  %1304 = vmatprep.subr.mxu0 0.0
  %1305 = vmatpush1.msra.mxu0 %v1280
  %1306 = vmatprep.subr.mxu0 0.0
  %1307 = vmatpush1.msra.mxu0 0.0
  %1308 = vmatprep.subr.mxu0 0.0
  %1309 = vmatpush1.msra.mxu0 0.0
  %1310 = vmatprep.subr.mxu0 0.0
  %1311 = vmatpush1.msra.mxu0 0.0
  %1312 = vmatprep.subr.mxu0 0.0
  %1313 = vmatpush1.msra.mxu0 0.0
  %1314 = vmatprep.subr.mxu0 0.0
  %1315 = vmatpush1.msra.mxu0 0.0
  %1316 = vmatprep.subr.mxu0 0.0
  %1317 = vmatpush1.msra.mxu0 0.0
  %1318 = vmatprep.subr.mxu0 0.0
  %1319 = vmatpush1.msra.mxu0 0.0
  %1320 = vmatprep.subr.mxu0 0.0
  %1321 = vmatpush1.msra.mxu0 0.0
  %1322 = vmatprep.subr.mxu0 0.0
  %1323 = vmatpush1.msra.mxu0 0.0
  %1324 = vmatprep.subr.mxu0 0.0
  %1325 = vmatpush1.msra.mxu0 0.0
  %1326 = vmatprep.subr.mxu0 0.0
  %1327 = vmatpush1.msra.mxu0 0.0
  %1328 = vmatprep.subr.mxu0 0.0
  %1329 = vmatpush1.msra.mxu0 0.0
  %1330 = vmatprep.subr.mxu0 0.0
  %1331 = vmatpush1.msra.mxu0 0.0
  %1332 = vmatprep.subr.mxu0 0.0
  %1333 = vmatpush1.msra.mxu0 0.0
  %1334 = vmatprep.subr.mxu0 0.0
  %1335 = vmatpush1.msra.mxu0 0.0
  %1336 = vmatprep.subr.mxu0 0.0
  %1337 = vmatpush1.msra.mxu0 0.0
  %1338 = vmatprep.subr.mxu0 0.0
  %1339 = vmatpush1.msra.mxu0 0.0
  %1340 = vmatprep.subr.mxu0 0.0
  %1341 = vmatpush1.msra.mxu0 0.0
  %1342 = vmatprep.subr.mxu0 0.0
  %1343 = vmatpush1.msra.mxu0 0.0
  %1344 = vmatprep.subr.mxu0 0.0
  %1345 = vmatpush1.msra.mxu0 0.0
  %1346 = vmatprep.subr.mxu0 0.0
  %1347 = vmatpush1.msra.mxu0 0.0
  %1348 = vmatprep.subr.mxu0 0.0
  %1349 = vmatpush1.msra.mxu0 0.0
  %1350 = vmatprep.subr.mxu0 0.0
  %1351 = vmatpush1.msra.mxu0 0.0
  %1352 = vmatprep.subr.mxu0 0.0
  %1353 = vmatpush1.msra.mxu0 0.0
  %1354 = vmatprep.subr.mxu0 0.0
  %1355 = vmatpush1.msra.mxu0 0.0
  %1356 = vmatprep.subr.mxu0 0.0
  %1357 = vmatpush1.msra.mxu0 0.0
  %1358 = vmatprep.subr.mxu0 0.0
  %1359 = vmatpush1.msra.mxu0 0.0
  %1360 = vmatprep.subr.mxu0 0.0
  %1361 = vmatpush1.msra.mxu0 0.0
  %1362 = vmatprep.mubr.f32.mxu0 0.0
  %1363 = vmatmul.mubr.f32.gmra.mrb[0].mxu0 %v1294
  %v1364 = vpop.f32.mrb[0].mxu0
  %v1365 = vadd.f32 %v1286, %v1364
  %v1366 = vpop.f32.mrb[0].mxu0
  %1367 = vmatprep.mubr.f32.mxu0 0.0
  %1368 = vmatmul.mubr.f32.gmra.mrb[0].mxu0 %v1296
  %v1369 = vpop.f32.mrb[0].mxu0
  %v1370 = vadd.f32 %v1286, %v1369
  %v1371 = vpop.f32.mrb[0].mxu0
  %1372 = vdwg.mxu0
  %v1373 = vxor.u32 %v1365, 2147483648
  %v1374 = vxor.u32 %v1370, 2147483648
  %v1375 = vmul.f32 %v1373, 1.442695
  %v1376 = vpow.pop %v1375
  %v1377 = vmul.f32 %v1374, 1.442695
  %v1378 = vpow.pop %v1377
  %v1379 = vadd.f32 %v1376, 1.0
  %v1380 = vadd.f32 %v1378, 1.0
  %v1381 = vrcp.pop %v1379
  %v1382 = vmul.f32 1.0, %v1381
  %v1383 = vrcp.pop %v1380
  %v1384 = vmul.f32 1.0, %v1383
  %1385 = vst.msk [vmem:[%s6] sm:$0xff] %vm39, %v1382
  %1386 = vst.msk [vmem:[%s6 + $0x8] sm:$0xff] %vm39, %v1384
  // Predicated region
  $region26: #{decoder_forward.1} parent=0 // pred_check
    _
  $region27: #{decoder_forward.1} parent=0 // pred_check_branch
    %1388 = sbr.rel (0) target = $region29
  $region28: #{decoder_forward.1} parent=0 // pred_region
    _
  $region29: #{decoder_forward.1} parent=0 // pred_fallthru
    _
  // Predicated region
  $region30: #{decoder_forward.1} parent=0 // pred_check
    _
  $region31: #{decoder_forward.1} parent=0 // pred_check_branch
    %1390 = sbr.rel (0) target = $region33
  $region32: #{decoder_forward.1} parent=0 // pred_region
    _
  $region33: #{decoder_forward.1} parent=0 // pred_fallthru
    _

</llo_original>
